<compile_context>
chip_gen: v7x
topology: tpu7x:2x2x1
jax: 0.10.0
libtpu: 0.0.40
codegen_flags: <defaults>
</compile_context>

<pallas_src>
import functools
import math

import jax
import jax.numpy as jnp
from jax.experimental import pallas as pl
from jax.experimental.pallas import tpu as pltpu


def _solid_conv_kernel(w_ref, xt_ref, o_ref, *, KK, C, C_B, O_T):
    """One grid step = (pixel tile, O tile, C block).

    w_ref : SMEM, flat (O*C*KK,) f32; index = (o*C + c)*KK + t
    xt_ref: VMEM, (KK, C_B, PS_T, 128) pre-shifted input taps (pixel-flat, lane dense)
    o_ref : VMEM, (O_T, PS_T, 128) output block == running min over channel blocks
    """
    o_blk = pl.program_id(1)
    c_blk = pl.program_id(2)

    # Init the running min (identity = +inf) at the start of the C reduction.
    @pl.when(c_blk == 0)
    def _init():
        o_ref[...] = jnp.full(o_ref.shape, jnp.inf, dtype=o_ref.dtype)

    o0 = o_blk * O_T
    c0 = c_blk * C_B

    accs = [None] * O_T
    for ci in range(C_B):
        # Load the KK shifted slabs for this channel once; reuse for all O_T outputs.
        xc = [xt_ref[t, ci] for t in range(KK)]          # each (PS_T, 128), 1 vreg
        for oi in range(O_T):
            base = ((o0 + oi) * C + (c0 + ci)) * KK      # dynamic scalar offset
            m = xc[0] + w_ref[base]                      # scalar-splat add
            for t in range(1, KK):
                m = jnp.maximum(m, xc[t] + w_ref[base + t])
            # Channel min is folded only AFTER the full K*K max for this channel.
            accs[oi] = m if accs[oi] is None else jnp.minimum(accs[oi], m)

    # One read-modify-write of the output block per O index per grid step.
    for oi in range(O_T):
        o_ref[oi] = jnp.minimum(o_ref[oi], accs[oi])


@functools.partial(
    jax.jit, static_argnames=("stride", "padding", "o_tile", "c_tile", "ps_tile"))
def solid_conv(x, w, stride=1, padding=0, *, o_tile=8, c_tile=2, ps_tile=8):
    """Tropical min-max-plus conv. x: (N,C,H,W) f32, w: (O,C,K,K) f32."""
    N, C, H, Wd = x.shape
    O, Cw, K, K2 = w.shape
    assert C == Cw and K == K2
    KK = K * K

    if padding > 0:
        x = jnp.pad(
            x,
            ((0, 0), (0, 0), (padding, padding), (padding, padding)),
            constant_values=-jnp.inf,  # max-plus identity
        )
    Hp, Wp = H + 2 * padding, Wd + 2 * padding
    OH = (Hp - K) // stride + 1
    OW = (Wp - K) // stride + 1

    # ---- Layout plumbing (wrapper-side, fused under jit) --------------------
    # Tap-major pre-shift (handles stride outside the kernel):
    #   xt[t, c, n*OH*OW + y*OW + x] = x_pad[n, c, y*s + ki, x*s + kj], t = ki*K + kj
    taps = []
    for ki in range(K):
        for kj in range(K):
            taps.append(
                x[:, :,
                  ki:ki + (OH - 1) * stride + 1:stride,
                  kj:kj + (OW - 1) * stride + 1:stride])        # (N, C, OH, OW)
    xt = jnp.stack(taps, axis=0)                                # (KK, N, C, OH, OW)
    xt = xt.transpose(0, 2, 1, 3, 4)                            # (KK, C, N, OH, OW)
    NP = N * OH * OW
    xt = xt.reshape(KK, C, NP)

    PL = 128                       # lane width (dense vregs, unmasked stores)
    PS_T = ps_tile                 # sublane rows per pixel tile
    assert PS_T % 8 == 0
    PS = ((NP + PL - 1) // PL + PS_T - 1) // PS_T * PS_T
    P_pad = PS * PL
    xt = jnp.pad(xt, ((0, 0), (0, 0), (0, P_pad - NP)))         # zero-fill, sliced off
    xt = xt.reshape(KK, C, PS, PL).astype(jnp.float32)

    O_T = min(o_tile, O)
    C_B = min(c_tile, C)
    # TODO(synk): pad O / C when not divisible by the tile sizes.
    assert O % O_T == 0 and C % C_B == 0

    w_flat = w.reshape(-1).astype(jnp.float32)                  # (O*C*KK,) -> SMEM

    grid = (PS // PS_T, O // O_T, C // C_B)                     # C reduction last

    kernel = functools.partial(_solid_conv_kernel, KK=KK, C=C, C_B=C_B, O_T=O_T)

    flops = 2 * N * O * C * OH * OW * KK                        # add + max per tap
    bytes_accessed = xt.size * 4 * (O // O_T) + w_flat.size * 4 + O * P_pad * 4

    out = pl.pallas_call(
        kernel,
        out_shape=jax.ShapeDtypeStruct((O, PS, PL), jnp.float32),
        grid=grid,
        in_specs=[
            pl.BlockSpec(memory_space=pltpu.MemorySpace.SMEM),          # weights
            pl.BlockSpec((KK, C_B, PS_T, PL), lambda p, o, c: (0, c, p, 0)),
        ],
        out_specs=pl.BlockSpec((O_T, PS_T, PL), lambda p, o, c: (o, p, 0)),
        compiler_params=pltpu.CompilerParams(
            dimension_semantics=("parallel", "parallel", "arbitrary"),
            vmem_limit_bytes=32 * 1024 * 1024),
        cost_estimate=pl.CostEstimate(
            flops=int(flops), transcendentals=0,
            bytes_accessed=int(bytes_accessed)),
    )(w_flat, xt)

    # Undo the layout plumbing.
    out = out.reshape(O, P_pad)[:, :NP].reshape(O, N, OH, OW).transpose(1, 0, 2, 3)
    return out


def _reference(x, w, stride=1, padding=0):
    """Pure-JAX reference of the same semantics."""
    N, C, H, Wd = x.shape
    O, _, K, _ = w.shape
    if padding > 0:
        x = jnp.pad(x, ((0, 0), (0, 0), (padding, padding), (padding, padding)),
                    constant_values=-jnp.inf)
    Hp, Wp = H + 2 * padding, Wd + 2 * padding
    OH = (Hp - K) // stride + 1
    OW = (Wp - K) // stride + 1
    acc = jnp.full((N, O, C, OH, OW), -jnp.inf, dtype=jnp.float32)
    for ki in range(K):
        for kj in range(K):
            patch = x[:, :, ki:ki + (OH - 1) * stride + 1:stride,
                         kj:kj + (OW - 1) * stride + 1:stride]          # (N,C,OH,OW)
            val = patch[:, None] + w[None, :, :, ki, kj][..., None, None]
            acc = jnp.maximum(acc, val)
    return jnp.min(acc, axis=2)


if __name__ == "__main__":
    # Deterministic small setup: N=2, C_in=4, C_out=8, H=W=16, K=3.
    N, C_in, C_out, H, W, K = 2, 4, 8, 16, 16, 3

    key = jax.random.PRNGKey(0)
    kx, kw = jax.random.split(key)

    x = jax.random.normal(kx, (N, C_in, H, W), dtype=jnp.float32)
    # kaiming_uniform_(a=sqrt(5)) -> U(-1/sqrt(fan_in), 1/sqrt(fan_in))
    fan_in = C_in * K * K
    bound = 1.0 / math.sqrt(fan_in)
    w = jax.random.uniform(kw, (C_out, C_in, K, K), dtype=jnp.float32,
                           minval=-bound, maxval=bound)

    # Config 1: stride=1, padding=0
    out1 = jax.block_until_ready(solid_conv(x, w, stride=1, padding=0))
    ref1 = _reference(x, w, stride=1, padding=0)
    assert out1.shape == (N, C_out, H - K + 1, W - K + 1), out1.shape
    assert jnp.allclose(out1, ref1, atol=1e-5, rtol=1e-5), "mismatch (stride=1, pad=0)"

    # Config 2: stride=2, padding=1 (exercises -inf padding + wrapper pre-decimation)
    out2 = jax.block_until_ready(solid_conv(x, w, stride=2, padding=1))
    ref2 = _reference(x, w, stride=2, padding=1)
    assert out2.shape == ref2.shape, (out2.shape, ref2.shape)
    assert jnp.allclose(out2, ref2, atol=1e-5, rtol=1e-5), "mismatch (stride=2, pad=1)"

    print("KERNEL_OK")
</pallas_src>

<mosaic_0001>
module attributes {stable_mosaic.version = 11 : i64} {
  func.func @_solid_conv_kernel(%arg0: i32, %arg1: i32, %arg2: i32, %arg3: memref<288xf32, #tpu.memory_space<smem>>, %arg4: memref<9x2x8x128xf32, #tpu.memory_space<vmem>>, %arg5: memref<8x8x128xf32, #tpu.memory_space<vmem>>) attributes {dimension_semantics = [#tpu.dimension_semantics<parallel>, #tpu.dimension_semantics<parallel>, #tpu.dimension_semantics<arbitrary>], iteration_bounds = array<i64: 1, 1, 2>, scalar_prefetch = 0 : i64, scratch_operands = 0 : i64, tpu.core_type = #tpu.core_type<tc>, window_params = [{transform_indices = @transform_0, window_bounds = array<i64: 288>}, {transform_indices = @transform_1, window_bounds = array<i64: 9, 2, 8, 128>}, {transform_indices = @transform_2, window_bounds = array<i64: 8, 8, 128>}]} {
    %c0_i32 = arith.constant 0 : i32
    %0 = arith.cmpi eq, %arg2, %c0_i32 : i32
    %1 = arith.extui %0 : i1 to i32
    %c0_i32_0 = arith.constant 0 : i32
    %2 = arith.cmpi ne, %1, %c0_i32_0 : i32
    scf.if %2 {
      %cst = arith.constant 0x7F800000 : f32
      %1009 = vector.broadcast %cst : f32 to vector<8x8x128xf32>
      %c0_297 = arith.constant 0 : index
      %c0_298 = arith.constant 0 : index
      %c0_299 = arith.constant 0 : index
      %1010 = vector.load %arg5[%c0_297, %c0_298, %c0_299] : memref<8x8x128xf32, #tpu.memory_space<vmem>>, vector<8x8x128xf32>
      tpu.vector_store %arg5[%c0_297, %c0_298, %c0_299], %1009 {strides = array<i32>} : memref<8x8x128xf32, #tpu.memory_space<vmem>>, vector<8x8x128xf32>,
    } else {
    }
    %c8_i32 = arith.constant 8 : i32
    %3 = arith.muli %arg1, %c8_i32 : i32
    %c2_i32 = arith.constant 2 : i32
    %4 = arith.muli %arg2, %c2_i32 : i32
    %c0 = arith.constant 0 : index
    %c0_1 = arith.constant 0 : index
    %c0_2 = arith.constant 0 : index
    %c0_3 = arith.constant 0 : index
    %5 = vector.load %arg4[%c0, %c0_1, %c0_2, %c0_3] : memref<9x2x8x128xf32, #tpu.memory_space<vmem>>, vector<1x1x8x128xf32>
    %6 = vector.shape_cast %5 : vector<1x1x8x128xf32> to vector<8x128xf32>
    %c1 = arith.constant 1 : index
    %c0_4 = arith.constant 0 : index
    %c0_5 = arith.constant 0 : index
    %c0_6 = arith.constant 0 : index
    %7 = vector.load %arg4[%c1, %c0_4, %c0_5, %c0_6] : memref<9x2x8x128xf32, #tpu.memory_space<vmem>>, vector<1x1x8x128xf32>
    %8 = vector.shape_cast %7 : vector<1x1x8x128xf32> to vector<8x128xf32>
    %c2 = arith.constant 2 : index
    %c0_7 = arith.constant 0 : index
    %c0_8 = arith.constant 0 : index
    %c0_9 = arith.constant 0 : index
    %9 = vector.load %arg4[%c2, %c0_7, %c0_8, %c0_9] : memref<9x2x8x128xf32, #tpu.memory_space<vmem>>, vector<1x1x8x128xf32>
    %10 = vector.shape_cast %9 : vector<1x1x8x128xf32> to vector<8x128xf32>
    %c3 = arith.constant 3 : index
    %c0_10 = arith.constant 0 : index
    %c0_11 = arith.constant 0 : index
    %c0_12 = arith.constant 0 : index
    %11 = vector.load %arg4[%c3, %c0_10, %c0_11, %c0_12] : memref<9x2x8x128xf32, #tpu.memory_space<vmem>>, vector<1x1x8x128xf32>
    %12 = vector.shape_cast %11 : vector<1x1x8x128xf32> to vector<8x128xf32>
    %c4 = arith.constant 4 : index
    %c0_13 = arith.constant 0 : index
    %c0_14 = arith.constant 0 : index
    %c0_15 = arith.constant 0 : index
    %13 = vector.load %arg4[%c4, %c0_13, %c0_14, %c0_15] : memref<9x2x8x128xf32, #tpu.memory_space<vmem>>, vector<1x1x8x128xf32>
    %14 = vector.shape_cast %13 : vector<1x1x8x128xf32> to vector<8x128xf32>
    %c5 = arith.constant 5 : index
    %c0_16 = arith.constant 0 : index
    %c0_17 = arith.constant 0 : index
    %c0_18 = arith.constant 0 : index
    %15 = vector.load %arg4[%c5, %c0_16, %c0_17, %c0_18] : memref<9x2x8x128xf32, #tpu.memory_space<vmem>>, vector<1x1x8x128xf32>
    %16 = vector.shape_cast %15 : vector<1x1x8x128xf32> to vector<8x128xf32>
    %c6 = arith.constant 6 : index
    %c0_19 = arith.constant 0 : index
    %c0_20 = arith.constant 0 : index
    %c0_21 = arith.constant 0 : index
    %17 = vector.load %arg4[%c6, %c0_19, %c0_20, %c0_21] : memref<9x2x8x128xf32, #tpu.memory_space<vmem>>, vector<1x1x8x128xf32>
    %18 = vector.shape_cast %17 : vector<1x1x8x128xf32> to vector<8x128xf32>
    %c7 = arith.constant 7 : index
    %c0_22 = arith.constant 0 : index
    %c0_23 = arith.constant 0 : index
    %c0_24 = arith.constant 0 : index
    %19 = vector.load %arg4[%c7, %c0_22, %c0_23, %c0_24] : memref<9x2x8x128xf32, #tpu.memory_space<vmem>>, vector<1x1x8x128xf32>
    %20 = vector.shape_cast %19 : vector<1x1x8x128xf32> to vector<8x128xf32>
    %c8 = arith.constant 8 : index
    %c0_25 = arith.constant 0 : index
    %c0_26 = arith.constant 0 : index
    %c0_27 = arith.constant 0 : index
    %21 = vector.load %arg4[%c8, %c0_25, %c0_26, %c0_27] : memref<9x2x8x128xf32, #tpu.memory_space<vmem>>, vector<1x1x8x128xf32>
    %22 = vector.shape_cast %21 : vector<1x1x8x128xf32> to vector<8x128xf32>
    %c0_i32_28 = arith.constant 0 : i32
    %23 = arith.addi %3, %c0_i32_28 : i32
    %c4_i32 = arith.constant 4 : i32
    %24 = arith.muli %23, %c4_i32 : i32
    %c0_i32_29 = arith.constant 0 : i32
    %25 = arith.addi %4, %c0_i32_29 : i32
    %26 = arith.addi %24, %25 : i32
    %c9_i32 = arith.constant 9 : i32
    %27 = arith.muli %26, %c9_i32 : i32
    %28 = arith.index_cast %27 : i32 to index
    %29 = memref.load %arg3[%28] : memref<288xf32, #tpu.memory_space<smem>>
    %30 = vector.broadcast %29 : f32 to vector<8x128xf32>
    %31 = arith.addf %6, %30 : vector<8x128xf32>
    %c1_i32 = arith.constant 1 : i32
    %32 = arith.addi %27, %c1_i32 : i32
    %33 = arith.index_cast %32 : i32 to index
    %34 = memref.load %arg3[%33] : memref<288xf32, #tpu.memory_space<smem>>
    %35 = vector.broadcast %34 : f32 to vector<8x128xf32>
    %36 = arith.addf %8, %35 : vector<8x128xf32>
    %37 = arith.maximumf %31, %36 : vector<8x128xf32>
    %c2_i32_30 = arith.constant 2 : i32
    %38 = arith.addi %27, %c2_i32_30 : i32
    %39 = arith.index_cast %38 : i32 to index
    %40 = memref.load %arg3[%39] : memref<288xf32, #tpu.memory_space<smem>>
    %41 = vector.broadcast %40 : f32 to vector<8x128xf32>
    %42 = arith.addf %10, %41 : vector<8x128xf32>
    %43 = arith.maximumf %37, %42 : vector<8x128xf32>
    %c3_i32 = arith.constant 3 : i32
    %44 = arith.addi %27, %c3_i32 : i32
    %45 = arith.index_cast %44 : i32 to index
    %46 = memref.load %arg3[%45] : memref<288xf32, #tpu.memory_space<smem>>
    %47 = vector.broadcast %46 : f32 to vector<8x128xf32>
    %48 = arith.addf %12, %47 : vector<8x128xf32>
    %49 = arith.maximumf %43, %48 : vector<8x128xf32>
    %c4_i32_31 = arith.constant 4 : i32
    %50 = arith.addi %27, %c4_i32_31 : i32
    %51 = arith.index_cast %50 : i32 to index
    %52 = memref.load %arg3[%51] : memref<288xf32, #tpu.memory_space<smem>>
    %53 = vector.broadcast %52 : f32 to vector<8x128xf32>
    %54 = arith.addf %14, %53 : vector<8x128xf32>
    %55 = arith.maximumf %49, %54 : vector<8x128xf32>
    %c5_i32 = arith.constant 5 : i32
    %56 = arith.addi %27, %c5_i32 : i32
    %57 = arith.index_cast %56 : i32 to index
    %58 = memref.load %arg3[%57] : memref<288xf32, #tpu.memory_space<smem>>
    %59 = vector.broadcast %58 : f32 to vector<8x128xf32>
    %60 = arith.addf %16, %59 : vector<8x128xf32>
    %61 = arith.maximumf %55, %60 : vector<8x128xf32>
    %c6_i32 = arith.constant 6 : i32
    %62 = arith.addi %27, %c6_i32 : i32
    %63 = arith.index_cast %62 : i32 to index
    %64 = memref.load %arg3[%63] : memref<288xf32, #tpu.memory_space<smem>>
    %65 = vector.broadcast %64 : f32 to vector<8x128xf32>
    %66 = arith.addf %18, %65 : vector<8x128xf32>
    %67 = arith.maximumf %61, %66 : vector<8x128xf32>
    %c7_i32 = arith.constant 7 : i32
    %68 = arith.addi %27, %c7_i32 : i32
    %69 = arith.index_cast %68 : i32 to index
    %70 = memref.load %arg3[%69] : memref<288xf32, #tpu.memory_space<smem>>
    %71 = vector.broadcast %70 : f32 to vector<8x128xf32>
    %72 = arith.addf %20, %71 : vector<8x128xf32>
    %73 = arith.maximumf %67, %72 : vector<8x128xf32>
    %c8_i32_32 = arith.constant 8 : i32
    %74 = arith.addi %27, %c8_i32_32 : i32
    %75 = arith.index_cast %74 : i32 to index
    %76 = memref.load %arg3[%75] : memref<288xf32, #tpu.memory_space<smem>>
    %77 = vector.broadcast %76 : f32 to vector<8x128xf32>
    %78 = arith.addf %22, %77 : vector<8x128xf32>
    %79 = arith.maximumf %73, %78 : vector<8x128xf32>
    %c1_i32_33 = arith.constant 1 : i32
    %80 = arith.addi %3, %c1_i32_33 : i32
    %c4_i32_34 = arith.constant 4 : i32
    %81 = arith.muli %80, %c4_i32_34 : i32
    %c0_i32_35 = arith.constant 0 : i32
    %82 = arith.addi %4, %c0_i32_35 : i32
    %83 = arith.addi %81, %82 : i32
    %c9_i32_36 = arith.constant 9 : i32
    %84 = arith.muli %83, %c9_i32_36 : i32
    %85 = arith.index_cast %84 : i32 to index
    %86 = memref.load %arg3[%85] : memref<288xf32, #tpu.memory_space<smem>>
    %87 = vector.broadcast %86 : f32 to vector<8x128xf32>
    %88 = arith.addf %6, %87 : vector<8x128xf32>
    %c1_i32_37 = arith.constant 1 : i32
    %89 = arith.addi %84, %c1_i32_37 : i32
    %90 = arith.index_cast %89 : i32 to index
    %91 = memref.load %arg3[%90] : memref<288xf32, #tpu.memory_space<smem>>
    %92 = vector.broadcast %91 : f32 to vector<8x128xf32>
    %93 = arith.addf %8, %92 : vector<8x128xf32>
    %94 = arith.maximumf %88, %93 : vector<8x128xf32>
    %c2_i32_38 = arith.constant 2 : i32
    %95 = arith.addi %84, %c2_i32_38 : i32
    %96 = arith.index_cast %95 : i32 to index
    %97 = memref.load %arg3[%96] : memref<288xf32, #tpu.memory_space<smem>>
    %98 = vector.broadcast %97 : f32 to vector<8x128xf32>
    %99 = arith.addf %10, %98 : vector<8x128xf32>
    %100 = arith.maximumf %94, %99 : vector<8x128xf32>
    %c3_i32_39 = arith.constant 3 : i32
    %101 = arith.addi %84, %c3_i32_39 : i32
    %102 = arith.index_cast %101 : i32 to index
    %103 = memref.load %arg3[%102] : memref<288xf32, #tpu.memory_space<smem>>
    %104 = vector.broadcast %103 : f32 to vector<8x128xf32>
    %105 = arith.addf %12, %104 : vector<8x128xf32>
    %106 = arith.maximumf %100, %105 : vector<8x128xf32>
    %c4_i32_40 = arith.constant 4 : i32
    %107 = arith.addi %84, %c4_i32_40 : i32
    %108 = arith.index_cast %107 : i32 to index
    %109 = memref.load %arg3[%108] : memref<288xf32, #tpu.memory_space<smem>>
    %110 = vector.broadcast %109 : f32 to vector<8x128xf32>
    %111 = arith.addf %14, %110 : vector<8x128xf32>
    %112 = arith.maximumf %106, %111 : vector<8x128xf32>
    %c5_i32_41 = arith.constant 5 : i32
    %113 = arith.addi %84, %c5_i32_41 : i32
    %114 = arith.index_cast %113 : i32 to index
    %115 = memref.load %arg3[%114] : memref<288xf32, #tpu.memory_space<smem>>
    %116 = vector.broadcast %115 : f32 to vector<8x128xf32>
    %117 = arith.addf %16, %116 : vector<8x128xf32>
    %118 = arith.maximumf %112, %117 : vector<8x128xf32>
    %c6_i32_42 = arith.constant 6 : i32
    %119 = arith.addi %84, %c6_i32_42 : i32
    %120 = arith.index_cast %119 : i32 to index
    %121 = memref.load %arg3[%120] : memref<288xf32, #tpu.memory_space<smem>>
    %122 = vector.broadcast %121 : f32 to vector<8x128xf32>
    %123 = arith.addf %18, %122 : vector<8x128xf32>
    %124 = arith.maximumf %118, %123 : vector<8x128xf32>
    %c7_i32_43 = arith.constant 7 : i32
    %125 = arith.addi %84, %c7_i32_43 : i32
    %126 = arith.index_cast %125 : i32 to index
    %127 = memref.load %arg3[%126] : memref<288xf32, #tpu.memory_space<smem>>
    %128 = vector.broadcast %127 : f32 to vector<8x128xf32>
    %129 = arith.addf %20, %128 : vector<8x128xf32>
    %130 = arith.maximumf %124, %129 : vector<8x128xf32>
    %c8_i32_44 = arith.constant 8 : i32
    %131 = arith.addi %84, %c8_i32_44 : i32
    %132 = arith.index_cast %131 : i32 to index
    %133 = memref.load %arg3[%132] : memref<288xf32, #tpu.memory_space<smem>>
    %134 = vector.broadcast %133 : f32 to vector<8x128xf32>
    %135 = arith.addf %22, %134 : vector<8x128xf32>
    %136 = arith.maximumf %130, %135 : vector<8x128xf32>
    %c2_i32_45 = arith.constant 2 : i32
    %137 = arith.addi %3, %c2_i32_45 : i32
    %c4_i32_46 = arith.constant 4 : i32
    %138 = arith.muli %137, %c4_i32_46 : i32
    %c0_i32_47 = arith.constant 0 : i32
    %139 = arith.addi %4, %c0_i32_47 : i32
    %140 = arith.addi %138, %139 : i32
    %c9_i32_48 = arith.constant 9 : i32
    %141 = arith.muli %140, %c9_i32_48 : i32
    %142 = arith.index_cast %141 : i32 to index
    %143 = memref.load %arg3[%142] : memref<288xf32, #tpu.memory_space<smem>>
    %144 = vector.broadcast %143 : f32 to vector<8x128xf32>
    %145 = arith.addf %6, %144 : vector<8x128xf32>
    %c1_i32_49 = arith.constant 1 : i32
    %146 = arith.addi %141, %c1_i32_49 : i32
    %147 = arith.index_cast %146 : i32 to index
    %148 = memref.load %arg3[%147] : memref<288xf32, #tpu.memory_space<smem>>
    %149 = vector.broadcast %148 : f32 to vector<8x128xf32>
    %150 = arith.addf %8, %149 : vector<8x128xf32>
    %151 = arith.maximumf %145, %150 : vector<8x128xf32>
    %c2_i32_50 = arith.constant 2 : i32
    %152 = arith.addi %141, %c2_i32_50 : i32
    %153 = arith.index_cast %152 : i32 to index
    %154 = memref.load %arg3[%153] : memref<288xf32, #tpu.memory_space<smem>>
    %155 = vector.broadcast %154 : f32 to vector<8x128xf32>
    %156 = arith.addf %10, %155 : vector<8x128xf32>
    %157 = arith.maximumf %151, %156 : vector<8x128xf32>
    %c3_i32_51 = arith.constant 3 : i32
    %158 = arith.addi %141, %c3_i32_51 : i32
    %159 = arith.index_cast %158 : i32 to index
    %160 = memref.load %arg3[%159] : memref<288xf32, #tpu.memory_space<smem>>
    %161 = vector.broadcast %160 : f32 to vector<8x128xf32>
    %162 = arith.addf %12, %161 : vector<8x128xf32>
    %163 = arith.maximumf %157, %162 : vector<8x128xf32>
    %c4_i32_52 = arith.constant 4 : i32
    %164 = arith.addi %141, %c4_i32_52 : i32
    %165 = arith.index_cast %164 : i32 to index
    %166 = memref.load %arg3[%165] : memref<288xf32, #tpu.memory_space<smem>>
    %167 = vector.broadcast %166 : f32 to vector<8x128xf32>
    %168 = arith.addf %14, %167 : vector<8x128xf32>
    %169 = arith.maximumf %163, %168 : vector<8x128xf32>
    %c5_i32_53 = arith.constant 5 : i32
    %170 = arith.addi %141, %c5_i32_53 : i32
    %171 = arith.index_cast %170 : i32 to index
    %172 = memref.load %arg3[%171] : memref<288xf32, #tpu.memory_space<smem>>
    %173 = vector.broadcast %172 : f32 to vector<8x128xf32>
    %174 = arith.addf %16, %173 : vector<8x128xf32>
    %175 = arith.maximumf %169, %174 : vector<8x128xf32>
    %c6_i32_54 = arith.constant 6 : i32
    %176 = arith.addi %141, %c6_i32_54 : i32
    %177 = arith.index_cast %176 : i32 to index
    %178 = memref.load %arg3[%177] : memref<288xf32, #tpu.memory_space<smem>>
    %179 = vector.broadcast %178 : f32 to vector<8x128xf32>
    %180 = arith.addf %18, %179 : vector<8x128xf32>
    %181 = arith.maximumf %175, %180 : vector<8x128xf32>
    %c7_i32_55 = arith.constant 7 : i32
    %182 = arith.addi %141, %c7_i32_55 : i32
    %183 = arith.index_cast %182 : i32 to index
    %184 = memref.load %arg3[%183] : memref<288xf32, #tpu.memory_space<smem>>
    %185 = vector.broadcast %184 : f32 to vector<8x128xf32>
    %186 = arith.addf %20, %185 : vector<8x128xf32>
    %187 = arith.maximumf %181, %186 : vector<8x128xf32>
    %c8_i32_56 = arith.constant 8 : i32
    %188 = arith.addi %141, %c8_i32_56 : i32
    %189 = arith.index_cast %188 : i32 to index
    %190 = memref.load %arg3[%189] : memref<288xf32, #tpu.memory_space<smem>>
    %191 = vector.broadcast %190 : f32 to vector<8x128xf32>
    %192 = arith.addf %22, %191 : vector<8x128xf32>
    %193 = arith.maximumf %187, %192 : vector<8x128xf32>
    %c3_i32_57 = arith.constant 3 : i32
    %194 = arith.addi %3, %c3_i32_57 : i32
    %c4_i32_58 = arith.constant 4 : i32
    %195 = arith.muli %194, %c4_i32_58 : i32
    %c0_i32_59 = arith.constant 0 : i32
    %196 = arith.addi %4, %c0_i32_59 : i32
    %197 = arith.addi %195, %196 : i32
    %c9_i32_60 = arith.constant 9 : i32
    %198 = arith.muli %197, %c9_i32_60 : i32
    %199 = arith.index_cast %198 : i32 to index
    %200 = memref.load %arg3[%199] : memref<288xf32, #tpu.memory_space<smem>>
    %201 = vector.broadcast %200 : f32 to vector<8x128xf32>
    %202 = arith.addf %6, %201 : vector<8x128xf32>
    %c1_i32_61 = arith.constant 1 : i32
    %203 = arith.addi %198, %c1_i32_61 : i32
    %204 = arith.index_cast %203 : i32 to index
    %205 = memref.load %arg3[%204] : memref<288xf32, #tpu.memory_space<smem>>
    %206 = vector.broadcast %205 : f32 to vector<8x128xf32>
    %207 = arith.addf %8, %206 : vector<8x128xf32>
    %208 = arith.maximumf %202, %207 : vector<8x128xf32>
    %c2_i32_62 = arith.constant 2 : i32
    %209 = arith.addi %198, %c2_i32_62 : i32
    %210 = arith.index_cast %209 : i32 to index
    %211 = memref.load %arg3[%210] : memref<288xf32, #tpu.memory_space<smem>>
    %212 = vector.broadcast %211 : f32 to vector<8x128xf32>
    %213 = arith.addf %10, %212 : vector<8x128xf32>
    %214 = arith.maximumf %208, %213 : vector<8x128xf32>
    %c3_i32_63 = arith.constant 3 : i32
    %215 = arith.addi %198, %c3_i32_63 : i32
    %216 = arith.index_cast %215 : i32 to index
    %217 = memref.load %arg3[%216] : memref<288xf32, #tpu.memory_space<smem>>
    %218 = vector.broadcast %217 : f32 to vector<8x128xf32>
    %219 = arith.addf %12, %218 : vector<8x128xf32>
    %220 = arith.maximumf %214, %219 : vector<8x128xf32>
    %c4_i32_64 = arith.constant 4 : i32
    %221 = arith.addi %198, %c4_i32_64 : i32
    %222 = arith.index_cast %221 : i32 to index
    %223 = memref.load %arg3[%222] : memref<288xf32, #tpu.memory_space<smem>>
    %224 = vector.broadcast %223 : f32 to vector<8x128xf32>
    %225 = arith.addf %14, %224 : vector<8x128xf32>
    %226 = arith.maximumf %220, %225 : vector<8x128xf32>
    %c5_i32_65 = arith.constant 5 : i32
    %227 = arith.addi %198, %c5_i32_65 : i32
    %228 = arith.index_cast %227 : i32 to index
    %229 = memref.load %arg3[%228] : memref<288xf32, #tpu.memory_space<smem>>
    %230 = vector.broadcast %229 : f32 to vector<8x128xf32>
    %231 = arith.addf %16, %230 : vector<8x128xf32>
    %232 = arith.maximumf %226, %231 : vector<8x128xf32>
    %c6_i32_66 = arith.constant 6 : i32
    %233 = arith.addi %198, %c6_i32_66 : i32
    %234 = arith.index_cast %233 : i32 to index
    %235 = memref.load %arg3[%234] : memref<288xf32, #tpu.memory_space<smem>>
    %236 = vector.broadcast %235 : f32 to vector<8x128xf32>
    %237 = arith.addf %18, %236 : vector<8x128xf32>
    %238 = arith.maximumf %232, %237 : vector<8x128xf32>
    %c7_i32_67 = arith.constant 7 : i32
    %239 = arith.addi %198, %c7_i32_67 : i32
    %240 = arith.index_cast %239 : i32 to index
    %241 = memref.load %arg3[%240] : memref<288xf32, #tpu.memory_space<smem>>
    %242 = vector.broadcast %241 : f32 to vector<8x128xf32>
    %243 = arith.addf %20, %242 : vector<8x128xf32>
    %244 = arith.maximumf %238, %243 : vector<8x128xf32>
    %c8_i32_68 = arith.constant 8 : i32
    %245 = arith.addi %198, %c8_i32_68 : i32
    %246 = arith.index_cast %245 : i32 to index
    %247 = memref.load %arg3[%246] : memref<288xf32, #tpu.memory_space<smem>>
    %248 = vector.broadcast %247 : f32 to vector<8x128xf32>
    %249 = arith.addf %22, %248 : vector<8x128xf32>
    %250 = arith.maximumf %244, %249 : vector<8x128xf32>
    %c4_i32_69 = arith.constant 4 : i32
    %251 = arith.addi %3, %c4_i32_69 : i32
    %c4_i32_70 = arith.constant 4 : i32
    %252 = arith.muli %251, %c4_i32_70 : i32
    %c0_i32_71 = arith.constant 0 : i32
    %253 = arith.addi %4, %c0_i32_71 : i32
    %254 = arith.addi %252, %253 : i32
    %c9_i32_72 = arith.constant 9 : i32
    %255 = arith.muli %254, %c9_i32_72 : i32
    %256 = arith.index_cast %255 : i32 to index
    %257 = memref.load %arg3[%256] : memref<288xf32, #tpu.memory_space<smem>>
    %258 = vector.broadcast %257 : f32 to vector<8x128xf32>
    %259 = arith.addf %6, %258 : vector<8x128xf32>
    %c1_i32_73 = arith.constant 1 : i32
    %260 = arith.addi %255, %c1_i32_73 : i32
    %261 = arith.index_cast %260 : i32 to index
    %262 = memref.load %arg3[%261] : memref<288xf32, #tpu.memory_space<smem>>
    %263 = vector.broadcast %262 : f32 to vector<8x128xf32>
    %264 = arith.addf %8, %263 : vector<8x128xf32>
    %265 = arith.maximumf %259, %264 : vector<8x128xf32>
    %c2_i32_74 = arith.constant 2 : i32
    %266 = arith.addi %255, %c2_i32_74 : i32
    %267 = arith.index_cast %266 : i32 to index
    %268 = memref.load %arg3[%267] : memref<288xf32, #tpu.memory_space<smem>>
    %269 = vector.broadcast %268 : f32 to vector<8x128xf32>
    %270 = arith.addf %10, %269 : vector<8x128xf32>
    %271 = arith.maximumf %265, %270 : vector<8x128xf32>
    %c3_i32_75 = arith.constant 3 : i32
    %272 = arith.addi %255, %c3_i32_75 : i32
    %273 = arith.index_cast %272 : i32 to index
    %274 = memref.load %arg3[%273] : memref<288xf32, #tpu.memory_space<smem>>
    %275 = vector.broadcast %274 : f32 to vector<8x128xf32>
    %276 = arith.addf %12, %275 : vector<8x128xf32>
    %277 = arith.maximumf %271, %276 : vector<8x128xf32>
    %c4_i32_76 = arith.constant 4 : i32
    %278 = arith.addi %255, %c4_i32_76 : i32
    %279 = arith.index_cast %278 : i32 to index
    %280 = memref.load %arg3[%279] : memref<288xf32, #tpu.memory_space<smem>>
    %281 = vector.broadcast %280 : f32 to vector<8x128xf32>
    %282 = arith.addf %14, %281 : vector<8x128xf32>
    %283 = arith.maximumf %277, %282 : vector<8x128xf32>
    %c5_i32_77 = arith.constant 5 : i32
    %284 = arith.addi %255, %c5_i32_77 : i32
    %285 = arith.index_cast %284 : i32 to index
    %286 = memref.load %arg3[%285] : memref<288xf32, #tpu.memory_space<smem>>
    %287 = vector.broadcast %286 : f32 to vector<8x128xf32>
    %288 = arith.addf %16, %287 : vector<8x128xf32>
    %289 = arith.maximumf %283, %288 : vector<8x128xf32>
    %c6_i32_78 = arith.constant 6 : i32
    %290 = arith.addi %255, %c6_i32_78 : i32
    %291 = arith.index_cast %290 : i32 to index
    %292 = memref.load %arg3[%291] : memref<288xf32, #tpu.memory_space<smem>>
    %293 = vector.broadcast %292 : f32 to vector<8x128xf32>
    %294 = arith.addf %18, %293 : vector<8x128xf32>
    %295 = arith.maximumf %289, %294 : vector<8x128xf32>
    %c7_i32_79 = arith.constant 7 : i32
    %296 = arith.addi %255, %c7_i32_79 : i32
    %297 = arith.index_cast %296 : i32 to index
    %298 = memref.load %arg3[%297] : memref<288xf32, #tpu.memory_space<smem>>
    %299 = vector.broadcast %298 : f32 to vector<8x128xf32>
    %300 = arith.addf %20, %299 : vector<8x128xf32>
    %301 = arith.maximumf %295, %300 : vector<8x128xf32>
    %c8_i32_80 = arith.constant 8 : i32
    %302 = arith.addi %255, %c8_i32_80 : i32
    %303 = arith.index_cast %302 : i32 to index
    %304 = memref.load %arg3[%303] : memref<288xf32, #tpu.memory_space<smem>>
    %305 = vector.broadcast %304 : f32 to vector<8x128xf32>
    %306 = arith.addf %22, %305 : vector<8x128xf32>
    %307 = arith.maximumf %301, %306 : vector<8x128xf32>
    %c5_i32_81 = arith.constant 5 : i32
    %308 = arith.addi %3, %c5_i32_81 : i32
    %c4_i32_82 = arith.constant 4 : i32
    %309 = arith.muli %308, %c4_i32_82 : i32
    %c0_i32_83 = arith.constant 0 : i32
    %310 = arith.addi %4, %c0_i32_83 : i32
    %311 = arith.addi %309, %310 : i32
    %c9_i32_84 = arith.constant 9 : i32
    %312 = arith.muli %311, %c9_i32_84 : i32
    %313 = arith.index_cast %312 : i32 to index
    %314 = memref.load %arg3[%313] : memref<288xf32, #tpu.memory_space<smem>>
    %315 = vector.broadcast %314 : f32 to vector<8x128xf32>
    %316 = arith.addf %6, %315 : vector<8x128xf32>
    %c1_i32_85 = arith.constant 1 : i32
    %317 = arith.addi %312, %c1_i32_85 : i32
    %318 = arith.index_cast %317 : i32 to index
    %319 = memref.load %arg3[%318] : memref<288xf32, #tpu.memory_space<smem>>
    %320 = vector.broadcast %319 : f32 to vector<8x128xf32>
    %321 = arith.addf %8, %320 : vector<8x128xf32>
    %322 = arith.maximumf %316, %321 : vector<8x128xf32>
    %c2_i32_86 = arith.constant 2 : i32
    %323 = arith.addi %312, %c2_i32_86 : i32
    %324 = arith.index_cast %323 : i32 to index
    %325 = memref.load %arg3[%324] : memref<288xf32, #tpu.memory_space<smem>>
    %326 = vector.broadcast %325 : f32 to vector<8x128xf32>
    %327 = arith.addf %10, %326 : vector<8x128xf32>
    %328 = arith.maximumf %322, %327 : vector<8x128xf32>
    %c3_i32_87 = arith.constant 3 : i32
    %329 = arith.addi %312, %c3_i32_87 : i32
    %330 = arith.index_cast %329 : i32 to index
    %331 = memref.load %arg3[%330] : memref<288xf32, #tpu.memory_space<smem>>
    %332 = vector.broadcast %331 : f32 to vector<8x128xf32>
    %333 = arith.addf %12, %332 : vector<8x128xf32>
    %334 = arith.maximumf %328, %333 : vector<8x128xf32>
    %c4_i32_88 = arith.constant 4 : i32
    %335 = arith.addi %312, %c4_i32_88 : i32
    %336 = arith.index_cast %335 : i32 to index
    %337 = memref.load %arg3[%336] : memref<288xf32, #tpu.memory_space<smem>>
    %338 = vector.broadcast %337 : f32 to vector<8x128xf32>
    %339 = arith.addf %14, %338 : vector<8x128xf32>
    %340 = arith.maximumf %334, %339 : vector<8x128xf32>
    %c5_i32_89 = arith.constant 5 : i32
    %341 = arith.addi %312, %c5_i32_89 : i32
    %342 = arith.index_cast %341 : i32 to index
    %343 = memref.load %arg3[%342] : memref<288xf32, #tpu.memory_space<smem>>
    %344 = vector.broadcast %343 : f32 to vector<8x128xf32>
    %345 = arith.addf %16, %344 : vector<8x128xf32>
    %346 = arith.maximumf %340, %345 : vector<8x128xf32>
    %c6_i32_90 = arith.constant 6 : i32
    %347 = arith.addi %312, %c6_i32_90 : i32
    %348 = arith.index_cast %347 : i32 to index
    %349 = memref.load %arg3[%348] : memref<288xf32, #tpu.memory_space<smem>>
    %350 = vector.broadcast %349 : f32 to vector<8x128xf32>
    %351 = arith.addf %18, %350 : vector<8x128xf32>
    %352 = arith.maximumf %346, %351 : vector<8x128xf32>
    %c7_i32_91 = arith.constant 7 : i32
    %353 = arith.addi %312, %c7_i32_91 : i32
    %354 = arith.index_cast %353 : i32 to index
    %355 = memref.load %arg3[%354] : memref<288xf32, #tpu.memory_space<smem>>
    %356 = vector.broadcast %355 : f32 to vector<8x128xf32>
    %357 = arith.addf %20, %356 : vector<8x128xf32>
    %358 = arith.maximumf %352, %357 : vector<8x128xf32>
    %c8_i32_92 = arith.constant 8 : i32
    %359 = arith.addi %312, %c8_i32_92 : i32
    %360 = arith.index_cast %359 : i32 to index
    %361 = memref.load %arg3[%360] : memref<288xf32, #tpu.memory_space<smem>>
    %362 = vector.broadcast %361 : f32 to vector<8x128xf32>
    %363 = arith.addf %22, %362 : vector<8x128xf32>
    %364 = arith.maximumf %358, %363 : vector<8x128xf32>
    %c6_i32_93 = arith.constant 6 : i32
    %365 = arith.addi %3, %c6_i32_93 : i32
    %c4_i32_94 = arith.constant 4 : i32
    %366 = arith.muli %365, %c4_i32_94 : i32
    %c0_i32_95 = arith.constant 0 : i32
    %367 = arith.addi %4, %c0_i32_95 : i32
    %368 = arith.addi %366, %367 : i32
    %c9_i32_96 = arith.constant 9 : i32
    %369 = arith.muli %368, %c9_i32_96 : i32
    %370 = arith.index_cast %369 : i32 to index
    %371 = memref.load %arg3[%370] : memref<288xf32, #tpu.memory_space<smem>>
    %372 = vector.broadcast %371 : f32 to vector<8x128xf32>
    %373 = arith.addf %6, %372 : vector<8x128xf32>
    %c1_i32_97 = arith.constant 1 : i32
    %374 = arith.addi %369, %c1_i32_97 : i32
    %375 = arith.index_cast %374 : i32 to index
    %376 = memref.load %arg3[%375] : memref<288xf32, #tpu.memory_space<smem>>
    %377 = vector.broadcast %376 : f32 to vector<8x128xf32>
    %378 = arith.addf %8, %377 : vector<8x128xf32>
    %379 = arith.maximumf %373, %378 : vector<8x128xf32>
    %c2_i32_98 = arith.constant 2 : i32
    %380 = arith.addi %369, %c2_i32_98 : i32
    %381 = arith.index_cast %380 : i32 to index
    %382 = memref.load %arg3[%381] : memref<288xf32, #tpu.memory_space<smem>>
    %383 = vector.broadcast %382 : f32 to vector<8x128xf32>
    %384 = arith.addf %10, %383 : vector<8x128xf32>
    %385 = arith.maximumf %379, %384 : vector<8x128xf32>
    %c3_i32_99 = arith.constant 3 : i32
    %386 = arith.addi %369, %c3_i32_99 : i32
    %387 = arith.index_cast %386 : i32 to index
    %388 = memref.load %arg3[%387] : memref<288xf32, #tpu.memory_space<smem>>
    %389 = vector.broadcast %388 : f32 to vector<8x128xf32>
    %390 = arith.addf %12, %389 : vector<8x128xf32>
    %391 = arith.maximumf %385, %390 : vector<8x128xf32>
    %c4_i32_100 = arith.constant 4 : i32
    %392 = arith.addi %369, %c4_i32_100 : i32
    %393 = arith.index_cast %392 : i32 to index
    %394 = memref.load %arg3[%393] : memref<288xf32, #tpu.memory_space<smem>>
    %395 = vector.broadcast %394 : f32 to vector<8x128xf32>
    %396 = arith.addf %14, %395 : vector<8x128xf32>
    %397 = arith.maximumf %391, %396 : vector<8x128xf32>
    %c5_i32_101 = arith.constant 5 : i32
    %398 = arith.addi %369, %c5_i32_101 : i32
    %399 = arith.index_cast %398 : i32 to index
    %400 = memref.load %arg3[%399] : memref<288xf32, #tpu.memory_space<smem>>
    %401 = vector.broadcast %400 : f32 to vector<8x128xf32>
    %402 = arith.addf %16, %401 : vector<8x128xf32>
    %403 = arith.maximumf %397, %402 : vector<8x128xf32>
    %c6_i32_102 = arith.constant 6 : i32
    %404 = arith.addi %369, %c6_i32_102 : i32
    %405 = arith.index_cast %404 : i32 to index
    %406 = memref.load %arg3[%405] : memref<288xf32, #tpu.memory_space<smem>>
    %407 = vector.broadcast %406 : f32 to vector<8x128xf32>
    %408 = arith.addf %18, %407 : vector<8x128xf32>
    %409 = arith.maximumf %403, %408 : vector<8x128xf32>
    %c7_i32_103 = arith.constant 7 : i32
    %410 = arith.addi %369, %c7_i32_103 : i32
    %411 = arith.index_cast %410 : i32 to index
    %412 = memref.load %arg3[%411] : memref<288xf32, #tpu.memory_space<smem>>
    %413 = vector.broadcast %412 : f32 to vector<8x128xf32>
    %414 = arith.addf %20, %413 : vector<8x128xf32>
    %415 = arith.maximumf %409, %414 : vector<8x128xf32>
    %c8_i32_104 = arith.constant 8 : i32
    %416 = arith.addi %369, %c8_i32_104 : i32
    %417 = arith.index_cast %416 : i32 to index
    %418 = memref.load %arg3[%417] : memref<288xf32, #tpu.memory_space<smem>>
    %419 = vector.broadcast %418 : f32 to vector<8x128xf32>
    %420 = arith.addf %22, %419 : vector<8x128xf32>
    %421 = arith.maximumf %415, %420 : vector<8x128xf32>
    %c7_i32_105 = arith.constant 7 : i32
    %422 = arith.addi %3, %c7_i32_105 : i32
    %c4_i32_106 = arith.constant 4 : i32
    %423 = arith.muli %422, %c4_i32_106 : i32
    %c0_i32_107 = arith.constant 0 : i32
    %424 = arith.addi %4, %c0_i32_107 : i32
    %425 = arith.addi %423, %424 : i32
    %c9_i32_108 = arith.constant 9 : i32
    %426 = arith.muli %425, %c9_i32_108 : i32
    %427 = arith.index_cast %426 : i32 to index
    %428 = memref.load %arg3[%427] : memref<288xf32, #tpu.memory_space<smem>>
    %429 = vector.broadcast %428 : f32 to vector<8x128xf32>
    %430 = arith.addf %6, %429 : vector<8x128xf32>
    %c1_i32_109 = arith.constant 1 : i32
    %431 = arith.addi %426, %c1_i32_109 : i32
    %432 = arith.index_cast %431 : i32 to index
    %433 = memref.load %arg3[%432] : memref<288xf32, #tpu.memory_space<smem>>
    %434 = vector.broadcast %433 : f32 to vector<8x128xf32>
    %435 = arith.addf %8, %434 : vector<8x128xf32>
    %436 = arith.maximumf %430, %435 : vector<8x128xf32>
    %c2_i32_110 = arith.constant 2 : i32
    %437 = arith.addi %426, %c2_i32_110 : i32
    %438 = arith.index_cast %437 : i32 to index
    %439 = memref.load %arg3[%438] : memref<288xf32, #tpu.memory_space<smem>>
    %440 = vector.broadcast %439 : f32 to vector<8x128xf32>
    %441 = arith.addf %10, %440 : vector<8x128xf32>
    %442 = arith.maximumf %436, %441 : vector<8x128xf32>
    %c3_i32_111 = arith.constant 3 : i32
    %443 = arith.addi %426, %c3_i32_111 : i32
    %444 = arith.index_cast %443 : i32 to index
    %445 = memref.load %arg3[%444] : memref<288xf32, #tpu.memory_space<smem>>
    %446 = vector.broadcast %445 : f32 to vector<8x128xf32>
    %447 = arith.addf %12, %446 : vector<8x128xf32>
    %448 = arith.maximumf %442, %447 : vector<8x128xf32>
    %c4_i32_112 = arith.constant 4 : i32
    %449 = arith.addi %426, %c4_i32_112 : i32
    %450 = arith.index_cast %449 : i32 to index
    %451 = memref.load %arg3[%450] : memref<288xf32, #tpu.memory_space<smem>>
    %452 = vector.broadcast %451 : f32 to vector<8x128xf32>
    %453 = arith.addf %14, %452 : vector<8x128xf32>
    %454 = arith.maximumf %448, %453 : vector<8x128xf32>
    %c5_i32_113 = arith.constant 5 : i32
    %455 = arith.addi %426, %c5_i32_113 : i32
    %456 = arith.index_cast %455 : i32 to index
    %457 = memref.load %arg3[%456] : memref<288xf32, #tpu.memory_space<smem>>
    %458 = vector.broadcast %457 : f32 to vector<8x128xf32>
    %459 = arith.addf %16, %458 : vector<8x128xf32>
    %460 = arith.maximumf %454, %459 : vector<8x128xf32>
    %c6_i32_114 = arith.constant 6 : i32
    %461 = arith.addi %426, %c6_i32_114 : i32
    %462 = arith.index_cast %461 : i32 to index
    %463 = memref.load %arg3[%462] : memref<288xf32, #tpu.memory_space<smem>>
    %464 = vector.broadcast %463 : f32 to vector<8x128xf32>
    %465 = arith.addf %18, %464 : vector<8x128xf32>
    %466 = arith.maximumf %460, %465 : vector<8x128xf32>
    %c7_i32_115 = arith.constant 7 : i32
    %467 = arith.addi %426, %c7_i32_115 : i32
    %468 = arith.index_cast %467 : i32 to index
    %469 = memref.load %arg3[%468] : memref<288xf32, #tpu.memory_space<smem>>
    %470 = vector.broadcast %469 : f32 to vector<8x128xf32>
    %471 = arith.addf %20, %470 : vector<8x128xf32>
    %472 = arith.maximumf %466, %471 : vector<8x128xf32>
    %c8_i32_116 = arith.constant 8 : i32
    %473 = arith.addi %426, %c8_i32_116 : i32
    %474 = arith.index_cast %473 : i32 to index
    %475 = memref.load %arg3[%474] : memref<288xf32, #tpu.memory_space<smem>>
    %476 = vector.broadcast %475 : f32 to vector<8x128xf32>
    %477 = arith.addf %22, %476 : vector<8x128xf32>
    %478 = arith.maximumf %472, %477 : vector<8x128xf32>
    %c0_117 = arith.constant 0 : index
    %c1_118 = arith.constant 1 : index
    %c0_119 = arith.constant 0 : index
    %c0_120 = arith.constant 0 : index
    %479 = vector.load %arg4[%c0_117, %c1_118, %c0_119, %c0_120] : memref<9x2x8x128xf32, #tpu.memory_space<vmem>>, vector<1x1x8x128xf32>
    %480 = vector.shape_cast %479 : vector<1x1x8x128xf32> to vector<8x128xf32>
    %c1_121 = arith.constant 1 : index
    %c1_122 = arith.constant 1 : index
    %c0_123 = arith.constant 0 : index
    %c0_124 = arith.constant 0 : index
    %481 = vector.load %arg4[%c1_121, %c1_122, %c0_123, %c0_124] : memref<9x2x8x128xf32, #tpu.memory_space<vmem>>, vector<1x1x8x128xf32>
    %482 = vector.shape_cast %481 : vector<1x1x8x128xf32> to vector<8x128xf32>
    %c2_125 = arith.constant 2 : index
    %c1_126 = arith.constant 1 : index
    %c0_127 = arith.constant 0 : index
    %c0_128 = arith.constant 0 : index
    %483 = vector.load %arg4[%c2_125, %c1_126, %c0_127, %c0_128] : memref<9x2x8x128xf32, #tpu.memory_space<vmem>>, vector<1x1x8x128xf32>
    %484 = vector.shape_cast %483 : vector<1x1x8x128xf32> to vector<8x128xf32>
    %c3_129 = arith.constant 3 : index
    %c1_130 = arith.constant 1 : index
    %c0_131 = arith.constant 0 : index
    %c0_132 = arith.constant 0 : index
    %485 = vector.load %arg4[%c3_129, %c1_130, %c0_131, %c0_132] : memref<9x2x8x128xf32, #tpu.memory_space<vmem>>, vector<1x1x8x128xf32>
    %486 = vector.shape_cast %485 : vector<1x1x8x128xf32> to vector<8x128xf32>
    %c4_133 = arith.constant 4 : index
    %c1_134 = arith.constant 1 : index
    %c0_135 = arith.constant 0 : index
    %c0_136 = arith.constant 0 : index
    %487 = vector.load %arg4[%c4_133, %c1_134, %c0_135, %c0_136] : memref<9x2x8x128xf32, #tpu.memory_space<vmem>>, vector<1x1x8x128xf32>
    %488 = vector.shape_cast %487 : vector<1x1x8x128xf32> to vector<8x128xf32>
    %c5_137 = arith.constant 5 : index
    %c1_138 = arith.constant 1 : index
    %c0_139 = arith.constant 0 : index
    %c0_140 = arith.constant 0 : index
    %489 = vector.load %arg4[%c5_137, %c1_138, %c0_139, %c0_140] : memref<9x2x8x128xf32, #tpu.memory_space<vmem>>, vector<1x1x8x128xf32>
    %490 = vector.shape_cast %489 : vector<1x1x8x128xf32> to vector<8x128xf32>
    %c6_141 = arith.constant 6 : index
    %c1_142 = arith.constant 1 : index
    %c0_143 = arith.constant 0 : index
    %c0_144 = arith.constant 0 : index
    %491 = vector.load %arg4[%c6_141, %c1_142, %c0_143, %c0_144] : memref<9x2x8x128xf32, #tpu.memory_space<vmem>>, vector<1x1x8x128xf32>
    %492 = vector.shape_cast %491 : vector<1x1x8x128xf32> to vector<8x128xf32>
    %c7_145 = arith.constant 7 : index
    %c1_146 = arith.constant 1 : index
    %c0_147 = arith.constant 0 : index
    %c0_148 = arith.constant 0 : index
    %493 = vector.load %arg4[%c7_145, %c1_146, %c0_147, %c0_148] : memref<9x2x8x128xf32, #tpu.memory_space<vmem>>, vector<1x1x8x128xf32>
    %494 = vector.shape_cast %493 : vector<1x1x8x128xf32> to vector<8x128xf32>
    %c8_149 = arith.constant 8 : index
    %c1_150 = arith.constant 1 : index
    %c0_151 = arith.constant 0 : index
    %c0_152 = arith.constant 0 : index
    %495 = vector.load %arg4[%c8_149, %c1_150, %c0_151, %c0_152] : memref<9x2x8x128xf32, #tpu.memory_space<vmem>>, vector<1x1x8x128xf32>
    %496 = vector.shape_cast %495 : vector<1x1x8x128xf32> to vector<8x128xf32>
    %c0_i32_153 = arith.constant 0 : i32
    %497 = arith.addi %3, %c0_i32_153 : i32
    %c4_i32_154 = arith.constant 4 : i32
    %498 = arith.muli %497, %c4_i32_154 : i32
    %c1_i32_155 = arith.constant 1 : i32
    %499 = arith.addi %4, %c1_i32_155 : i32
    %500 = arith.addi %498, %499 : i32
    %c9_i32_156 = arith.constant 9 : i32
    %501 = arith.muli %500, %c9_i32_156 : i32
    %502 = arith.index_cast %501 : i32 to index
    %503 = memref.load %arg3[%502] : memref<288xf32, #tpu.memory_space<smem>>
    %504 = vector.broadcast %503 : f32 to vector<8x128xf32>
    %505 = arith.addf %480, %504 : vector<8x128xf32>
    %c1_i32_157 = arith.constant 1 : i32
    %506 = arith.addi %501, %c1_i32_157 : i32
    %507 = arith.index_cast %506 : i32 to index
    %508 = memref.load %arg3[%507] : memref<288xf32, #tpu.memory_space<smem>>
    %509 = vector.broadcast %508 : f32 to vector<8x128xf32>
    %510 = arith.addf %482, %509 : vector<8x128xf32>
    %511 = arith.maximumf %505, %510 : vector<8x128xf32>
    %c2_i32_158 = arith.constant 2 : i32
    %512 = arith.addi %501, %c2_i32_158 : i32
    %513 = arith.index_cast %512 : i32 to index
    %514 = memref.load %arg3[%513] : memref<288xf32, #tpu.memory_space<smem>>
    %515 = vector.broadcast %514 : f32 to vector<8x128xf32>
    %516 = arith.addf %484, %515 : vector<8x128xf32>
    %517 = arith.maximumf %511, %516 : vector<8x128xf32>
    %c3_i32_159 = arith.constant 3 : i32
    %518 = arith.addi %501, %c3_i32_159 : i32
    %519 = arith.index_cast %518 : i32 to index
    %520 = memref.load %arg3[%519] : memref<288xf32, #tpu.memory_space<smem>>
    %521 = vector.broadcast %520 : f32 to vector<8x128xf32>
    %522 = arith.addf %486, %521 : vector<8x128xf32>
    %523 = arith.maximumf %517, %522 : vector<8x128xf32>
    %c4_i32_160 = arith.constant 4 : i32
    %524 = arith.addi %501, %c4_i32_160 : i32
    %525 = arith.index_cast %524 : i32 to index
    %526 = memref.load %arg3[%525] : memref<288xf32, #tpu.memory_space<smem>>
    %527 = vector.broadcast %526 : f32 to vector<8x128xf32>
    %528 = arith.addf %488, %527 : vector<8x128xf32>
    %529 = arith.maximumf %523, %528 : vector<8x128xf32>
    %c5_i32_161 = arith.constant 5 : i32
    %530 = arith.addi %501, %c5_i32_161 : i32
    %531 = arith.index_cast %530 : i32 to index
    %532 = memref.load %arg3[%531] : memref<288xf32, #tpu.memory_space<smem>>
    %533 = vector.broadcast %532 : f32 to vector<8x128xf32>
    %534 = arith.addf %490, %533 : vector<8x128xf32>
    %535 = arith.maximumf %529, %534 : vector<8x128xf32>
    %c6_i32_162 = arith.constant 6 : i32
    %536 = arith.addi %501, %c6_i32_162 : i32
    %537 = arith.index_cast %536 : i32 to index
    %538 = memref.load %arg3[%537] : memref<288xf32, #tpu.memory_space<smem>>
    %539 = vector.broadcast %538 : f32 to vector<8x128xf32>
    %540 = arith.addf %492, %539 : vector<8x128xf32>
    %541 = arith.maximumf %535, %540 : vector<8x128xf32>
    %c7_i32_163 = arith.constant 7 : i32
    %542 = arith.addi %501, %c7_i32_163 : i32
    %543 = arith.index_cast %542 : i32 to index
    %544 = memref.load %arg3[%543] : memref<288xf32, #tpu.memory_space<smem>>
    %545 = vector.broadcast %544 : f32 to vector<8x128xf32>
    %546 = arith.addf %494, %545 : vector<8x128xf32>
    %547 = arith.maximumf %541, %546 : vector<8x128xf32>
    %c8_i32_164 = arith.constant 8 : i32
    %548 = arith.addi %501, %c8_i32_164 : i32
    %549 = arith.index_cast %548 : i32 to index
    %550 = memref.load %arg3[%549] : memref<288xf32, #tpu.memory_space<smem>>
    %551 = vector.broadcast %550 : f32 to vector<8x128xf32>
    %552 = arith.addf %496, %551 : vector<8x128xf32>
    %553 = arith.maximumf %547, %552 : vector<8x128xf32>
    %554 = arith.minimumf %79, %553 : vector<8x128xf32>
    %c1_i32_165 = arith.constant 1 : i32
    %555 = arith.addi %3, %c1_i32_165 : i32
    %c4_i32_166 = arith.constant 4 : i32
    %556 = arith.muli %555, %c4_i32_166 : i32
    %c1_i32_167 = arith.constant 1 : i32
    %557 = arith.addi %4, %c1_i32_167 : i32
    %558 = arith.addi %556, %557 : i32
    %c9_i32_168 = arith.constant 9 : i32
    %559 = arith.muli %558, %c9_i32_168 : i32
    %560 = arith.index_cast %559 : i32 to index
    %561 = memref.load %arg3[%560] : memref<288xf32, #tpu.memory_space<smem>>
    %562 = vector.broadcast %561 : f32 to vector<8x128xf32>
    %563 = arith.addf %480, %562 : vector<8x128xf32>
    %c1_i32_169 = arith.constant 1 : i32
    %564 = arith.addi %559, %c1_i32_169 : i32
    %565 = arith.index_cast %564 : i32 to index
    %566 = memref.load %arg3[%565] : memref<288xf32, #tpu.memory_space<smem>>
    %567 = vector.broadcast %566 : f32 to vector<8x128xf32>
    %568 = arith.addf %482, %567 : vector<8x128xf32>
    %569 = arith.maximumf %563, %568 : vector<8x128xf32>
    %c2_i32_170 = arith.constant 2 : i32
    %570 = arith.addi %559, %c2_i32_170 : i32
    %571 = arith.index_cast %570 : i32 to index
    %572 = memref.load %arg3[%571] : memref<288xf32, #tpu.memory_space<smem>>
    %573 = vector.broadcast %572 : f32 to vector<8x128xf32>
    %574 = arith.addf %484, %573 : vector<8x128xf32>
    %575 = arith.maximumf %569, %574 : vector<8x128xf32>
    %c3_i32_171 = arith.constant 3 : i32
    %576 = arith.addi %559, %c3_i32_171 : i32
    %577 = arith.index_cast %576 : i32 to index
    %578 = memref.load %arg3[%577] : memref<288xf32, #tpu.memory_space<smem>>
    %579 = vector.broadcast %578 : f32 to vector<8x128xf32>
    %580 = arith.addf %486, %579 : vector<8x128xf32>
    %581 = arith.maximumf %575, %580 : vector<8x128xf32>
    %c4_i32_172 = arith.constant 4 : i32
    %582 = arith.addi %559, %c4_i32_172 : i32
    %583 = arith.index_cast %582 : i32 to index
    %584 = memref.load %arg3[%583] : memref<288xf32, #tpu.memory_space<smem>>
    %585 = vector.broadcast %584 : f32 to vector<8x128xf32>
    %586 = arith.addf %488, %585 : vector<8x128xf32>
    %587 = arith.maximumf %581, %586 : vector<8x128xf32>
    %c5_i32_173 = arith.constant 5 : i32
    %588 = arith.addi %559, %c5_i32_173 : i32
    %589 = arith.index_cast %588 : i32 to index
    %590 = memref.load %arg3[%589] : memref<288xf32, #tpu.memory_space<smem>>
    %591 = vector.broadcast %590 : f32 to vector<8x128xf32>
    %592 = arith.addf %490, %591 : vector<8x128xf32>
    %593 = arith.maximumf %587, %592 : vector<8x128xf32>
    %c6_i32_174 = arith.constant 6 : i32
    %594 = arith.addi %559, %c6_i32_174 : i32
    %595 = arith.index_cast %594 : i32 to index
    %596 = memref.load %arg3[%595] : memref<288xf32, #tpu.memory_space<smem>>
    %597 = vector.broadcast %596 : f32 to vector<8x128xf32>
    %598 = arith.addf %492, %597 : vector<8x128xf32>
    %599 = arith.maximumf %593, %598 : vector<8x128xf32>
    %c7_i32_175 = arith.constant 7 : i32
    %600 = arith.addi %559, %c7_i32_175 : i32
    %601 = arith.index_cast %600 : i32 to index
    %602 = memref.load %arg3[%601] : memref<288xf32, #tpu.memory_space<smem>>
    %603 = vector.broadcast %602 : f32 to vector<8x128xf32>
    %604 = arith.addf %494, %603 : vector<8x128xf32>
    %605 = arith.maximumf %599, %604 : vector<8x128xf32>
    %c8_i32_176 = arith.constant 8 : i32
    %606 = arith.addi %559, %c8_i32_176 : i32
    %607 = arith.index_cast %606 : i32 to index
    %608 = memref.load %arg3[%607] : memref<288xf32, #tpu.memory_space<smem>>
    %609 = vector.broadcast %608 : f32 to vector<8x128xf32>
    %610 = arith.addf %496, %609 : vector<8x128xf32>
    %611 = arith.maximumf %605, %610 : vector<8x128xf32>
    %612 = arith.minimumf %136, %611 : vector<8x128xf32>
    %c2_i32_177 = arith.constant 2 : i32
    %613 = arith.addi %3, %c2_i32_177 : i32
    %c4_i32_178 = arith.constant 4 : i32
    %614 = arith.muli %613, %c4_i32_178 : i32
    %c1_i32_179 = arith.constant 1 : i32
    %615 = arith.addi %4, %c1_i32_179 : i32
    %616 = arith.addi %614, %615 : i32
    %c9_i32_180 = arith.constant 9 : i32
    %617 = arith.muli %616, %c9_i32_180 : i32
    %618 = arith.index_cast %617 : i32 to index
    %619 = memref.load %arg3[%618] : memref<288xf32, #tpu.memory_space<smem>>
    %620 = vector.broadcast %619 : f32 to vector<8x128xf32>
    %621 = arith.addf %480, %620 : vector<8x128xf32>
    %c1_i32_181 = arith.constant 1 : i32
    %622 = arith.addi %617, %c1_i32_181 : i32
    %623 = arith.index_cast %622 : i32 to index
    %624 = memref.load %arg3[%623] : memref<288xf32, #tpu.memory_space<smem>>
    %625 = vector.broadcast %624 : f32 to vector<8x128xf32>
    %626 = arith.addf %482, %625 : vector<8x128xf32>
    %627 = arith.maximumf %621, %626 : vector<8x128xf32>
    %c2_i32_182 = arith.constant 2 : i32
    %628 = arith.addi %617, %c2_i32_182 : i32
    %629 = arith.index_cast %628 : i32 to index
    %630 = memref.load %arg3[%629] : memref<288xf32, #tpu.memory_space<smem>>
    %631 = vector.broadcast %630 : f32 to vector<8x128xf32>
    %632 = arith.addf %484, %631 : vector<8x128xf32>
    %633 = arith.maximumf %627, %632 : vector<8x128xf32>
    %c3_i32_183 = arith.constant 3 : i32
    %634 = arith.addi %617, %c3_i32_183 : i32
    %635 = arith.index_cast %634 : i32 to index
    %636 = memref.load %arg3[%635] : memref<288xf32, #tpu.memory_space<smem>>
    %637 = vector.broadcast %636 : f32 to vector<8x128xf32>
    %638 = arith.addf %486, %637 : vector<8x128xf32>
    %639 = arith.maximumf %633, %638 : vector<8x128xf32>
    %c4_i32_184 = arith.constant 4 : i32
    %640 = arith.addi %617, %c4_i32_184 : i32
    %641 = arith.index_cast %640 : i32 to index
    %642 = memref.load %arg3[%641] : memref<288xf32, #tpu.memory_space<smem>>
    %643 = vector.broadcast %642 : f32 to vector<8x128xf32>
    %644 = arith.addf %488, %643 : vector<8x128xf32>
    %645 = arith.maximumf %639, %644 : vector<8x128xf32>
    %c5_i32_185 = arith.constant 5 : i32
    %646 = arith.addi %617, %c5_i32_185 : i32
    %647 = arith.index_cast %646 : i32 to index
    %648 = memref.load %arg3[%647] : memref<288xf32, #tpu.memory_space<smem>>
    %649 = vector.broadcast %648 : f32 to vector<8x128xf32>
    %650 = arith.addf %490, %649 : vector<8x128xf32>
    %651 = arith.maximumf %645, %650 : vector<8x128xf32>
    %c6_i32_186 = arith.constant 6 : i32
    %652 = arith.addi %617, %c6_i32_186 : i32
    %653 = arith.index_cast %652 : i32 to index
    %654 = memref.load %arg3[%653] : memref<288xf32, #tpu.memory_space<smem>>
    %655 = vector.broadcast %654 : f32 to vector<8x128xf32>
    %656 = arith.addf %492, %655 : vector<8x128xf32>
    %657 = arith.maximumf %651, %656 : vector<8x128xf32>
    %c7_i32_187 = arith.constant 7 : i32
    %658 = arith.addi %617, %c7_i32_187 : i32
    %659 = arith.index_cast %658 : i32 to index
    %660 = memref.load %arg3[%659] : memref<288xf32, #tpu.memory_space<smem>>
    %661 = vector.broadcast %660 : f32 to vector<8x128xf32>
    %662 = arith.addf %494, %661 : vector<8x128xf32>
    %663 = arith.maximumf %657, %662 : vector<8x128xf32>
    %c8_i32_188 = arith.constant 8 : i32
    %664 = arith.addi %617, %c8_i32_188 : i32
    %665 = arith.index_cast %664 : i32 to index
    %666 = memref.load %arg3[%665] : memref<288xf32, #tpu.memory_space<smem>>
    %667 = vector.broadcast %666 : f32 to vector<8x128xf32>
    %668 = arith.addf %496, %667 : vector<8x128xf32>
    %669 = arith.maximumf %663, %668 : vector<8x128xf32>
    %670 = arith.minimumf %193, %669 : vector<8x128xf32>
    %c3_i32_189 = arith.constant 3 : i32
    %671 = arith.addi %3, %c3_i32_189 : i32
    %c4_i32_190 = arith.constant 4 : i32
    %672 = arith.muli %671, %c4_i32_190 : i32
    %c1_i32_191 = arith.constant 1 : i32
    %673 = arith.addi %4, %c1_i32_191 : i32
    %674 = arith.addi %672, %673 : i32
    %c9_i32_192 = arith.constant 9 : i32
    %675 = arith.muli %674, %c9_i32_192 : i32
    %676 = arith.index_cast %675 : i32 to index
    %677 = memref.load %arg3[%676] : memref<288xf32, #tpu.memory_space<smem>>
    %678 = vector.broadcast %677 : f32 to vector<8x128xf32>
    %679 = arith.addf %480, %678 : vector<8x128xf32>
    %c1_i32_193 = arith.constant 1 : i32
    %680 = arith.addi %675, %c1_i32_193 : i32
    %681 = arith.index_cast %680 : i32 to index
    %682 = memref.load %arg3[%681] : memref<288xf32, #tpu.memory_space<smem>>
    %683 = vector.broadcast %682 : f32 to vector<8x128xf32>
    %684 = arith.addf %482, %683 : vector<8x128xf32>
    %685 = arith.maximumf %679, %684 : vector<8x128xf32>
    %c2_i32_194 = arith.constant 2 : i32
    %686 = arith.addi %675, %c2_i32_194 : i32
    %687 = arith.index_cast %686 : i32 to index
    %688 = memref.load %arg3[%687] : memref<288xf32, #tpu.memory_space<smem>>
    %689 = vector.broadcast %688 : f32 to vector<8x128xf32>
    %690 = arith.addf %484, %689 : vector<8x128xf32>
    %691 = arith.maximumf %685, %690 : vector<8x128xf32>
    %c3_i32_195 = arith.constant 3 : i32
    %692 = arith.addi %675, %c3_i32_195 : i32
    %693 = arith.index_cast %692 : i32 to index
    %694 = memref.load %arg3[%693] : memref<288xf32, #tpu.memory_space<smem>>
    %695 = vector.broadcast %694 : f32 to vector<8x128xf32>
    %696 = arith.addf %486, %695 : vector<8x128xf32>
    %697 = arith.maximumf %691, %696 : vector<8x128xf32>
    %c4_i32_196 = arith.constant 4 : i32
    %698 = arith.addi %675, %c4_i32_196 : i32
    %699 = arith.index_cast %698 : i32 to index
    %700 = memref.load %arg3[%699] : memref<288xf32, #tpu.memory_space<smem>>
    %701 = vector.broadcast %700 : f32 to vector<8x128xf32>
    %702 = arith.addf %488, %701 : vector<8x128xf32>
    %703 = arith.maximumf %697, %702 : vector<8x128xf32>
    %c5_i32_197 = arith.constant 5 : i32
    %704 = arith.addi %675, %c5_i32_197 : i32
    %705 = arith.index_cast %704 : i32 to index
    %706 = memref.load %arg3[%705] : memref<288xf32, #tpu.memory_space<smem>>
    %707 = vector.broadcast %706 : f32 to vector<8x128xf32>
    %708 = arith.addf %490, %707 : vector<8x128xf32>
    %709 = arith.maximumf %703, %708 : vector<8x128xf32>
    %c6_i32_198 = arith.constant 6 : i32
    %710 = arith.addi %675, %c6_i32_198 : i32
    %711 = arith.index_cast %710 : i32 to index
    %712 = memref.load %arg3[%711] : memref<288xf32, #tpu.memory_space<smem>>
    %713 = vector.broadcast %712 : f32 to vector<8x128xf32>
    %714 = arith.addf %492, %713 : vector<8x128xf32>
    %715 = arith.maximumf %709, %714 : vector<8x128xf32>
    %c7_i32_199 = arith.constant 7 : i32
    %716 = arith.addi %675, %c7_i32_199 : i32
    %717 = arith.index_cast %716 : i32 to index
    %718 = memref.load %arg3[%717] : memref<288xf32, #tpu.memory_space<smem>>
    %719 = vector.broadcast %718 : f32 to vector<8x128xf32>
    %720 = arith.addf %494, %719 : vector<8x128xf32>
    %721 = arith.maximumf %715, %720 : vector<8x128xf32>
    %c8_i32_200 = arith.constant 8 : i32
    %722 = arith.addi %675, %c8_i32_200 : i32
    %723 = arith.index_cast %722 : i32 to index
    %724 = memref.load %arg3[%723] : memref<288xf32, #tpu.memory_space<smem>>
    %725 = vector.broadcast %724 : f32 to vector<8x128xf32>
    %726 = arith.addf %496, %725 : vector<8x128xf32>
    %727 = arith.maximumf %721, %726 : vector<8x128xf32>
    %728 = arith.minimumf %250, %727 : vector<8x128xf32>
    %c4_i32_201 = arith.constant 4 : i32
    %729 = arith.addi %3, %c4_i32_201 : i32
    %c4_i32_202 = arith.constant 4 : i32
    %730 = arith.muli %729, %c4_i32_202 : i32
    %c1_i32_203 = arith.constant 1 : i32
    %731 = arith.addi %4, %c1_i32_203 : i32
    %732 = arith.addi %730, %731 : i32
    %c9_i32_204 = arith.constant 9 : i32
    %733 = arith.muli %732, %c9_i32_204 : i32
    %734 = arith.index_cast %733 : i32 to index
    %735 = memref.load %arg3[%734] : memref<288xf32, #tpu.memory_space<smem>>
    %736 = vector.broadcast %735 : f32 to vector<8x128xf32>
    %737 = arith.addf %480, %736 : vector<8x128xf32>
    %c1_i32_205 = arith.constant 1 : i32
    %738 = arith.addi %733, %c1_i32_205 : i32
    %739 = arith.index_cast %738 : i32 to index
    %740 = memref.load %arg3[%739] : memref<288xf32, #tpu.memory_space<smem>>
    %741 = vector.broadcast %740 : f32 to vector<8x128xf32>
    %742 = arith.addf %482, %741 : vector<8x128xf32>
    %743 = arith.maximumf %737, %742 : vector<8x128xf32>
    %c2_i32_206 = arith.constant 2 : i32
    %744 = arith.addi %733, %c2_i32_206 : i32
    %745 = arith.index_cast %744 : i32 to index
    %746 = memref.load %arg3[%745] : memref<288xf32, #tpu.memory_space<smem>>
    %747 = vector.broadcast %746 : f32 to vector<8x128xf32>
    %748 = arith.addf %484, %747 : vector<8x128xf32>
    %749 = arith.maximumf %743, %748 : vector<8x128xf32>
    %c3_i32_207 = arith.constant 3 : i32
    %750 = arith.addi %733, %c3_i32_207 : i32
    %751 = arith.index_cast %750 : i32 to index
    %752 = memref.load %arg3[%751] : memref<288xf32, #tpu.memory_space<smem>>
    %753 = vector.broadcast %752 : f32 to vector<8x128xf32>
    %754 = arith.addf %486, %753 : vector<8x128xf32>
    %755 = arith.maximumf %749, %754 : vector<8x128xf32>
    %c4_i32_208 = arith.constant 4 : i32
    %756 = arith.addi %733, %c4_i32_208 : i32
    %757 = arith.index_cast %756 : i32 to index
    %758 = memref.load %arg3[%757] : memref<288xf32, #tpu.memory_space<smem>>
    %759 = vector.broadcast %758 : f32 to vector<8x128xf32>
    %760 = arith.addf %488, %759 : vector<8x128xf32>
    %761 = arith.maximumf %755, %760 : vector<8x128xf32>
    %c5_i32_209 = arith.constant 5 : i32
    %762 = arith.addi %733, %c5_i32_209 : i32
    %763 = arith.index_cast %762 : i32 to index
    %764 = memref.load %arg3[%763] : memref<288xf32, #tpu.memory_space<smem>>
    %765 = vector.broadcast %764 : f32 to vector<8x128xf32>
    %766 = arith.addf %490, %765 : vector<8x128xf32>
    %767 = arith.maximumf %761, %766 : vector<8x128xf32>
    %c6_i32_210 = arith.constant 6 : i32
    %768 = arith.addi %733, %c6_i32_210 : i32
    %769 = arith.index_cast %768 : i32 to index
    %770 = memref.load %arg3[%769] : memref<288xf32, #tpu.memory_space<smem>>
    %771 = vector.broadcast %770 : f32 to vector<8x128xf32>
    %772 = arith.addf %492, %771 : vector<8x128xf32>
    %773 = arith.maximumf %767, %772 : vector<8x128xf32>
    %c7_i32_211 = arith.constant 7 : i32
    %774 = arith.addi %733, %c7_i32_211 : i32
    %775 = arith.index_cast %774 : i32 to index
    %776 = memref.load %arg3[%775] : memref<288xf32, #tpu.memory_space<smem>>
    %777 = vector.broadcast %776 : f32 to vector<8x128xf32>
    %778 = arith.addf %494, %777 : vector<8x128xf32>
    %779 = arith.maximumf %773, %778 : vector<8x128xf32>
    %c8_i32_212 = arith.constant 8 : i32
    %780 = arith.addi %733, %c8_i32_212 : i32
    %781 = arith.index_cast %780 : i32 to index
    %782 = memref.load %arg3[%781] : memref<288xf32, #tpu.memory_space<smem>>
    %783 = vector.broadcast %782 : f32 to vector<8x128xf32>
    %784 = arith.addf %496, %783 : vector<8x128xf32>
    %785 = arith.maximumf %779, %784 : vector<8x128xf32>
    %786 = arith.minimumf %307, %785 : vector<8x128xf32>
    %c5_i32_213 = arith.constant 5 : i32
    %787 = arith.addi %3, %c5_i32_213 : i32
    %c4_i32_214 = arith.constant 4 : i32
    %788 = arith.muli %787, %c4_i32_214 : i32
    %c1_i32_215 = arith.constant 1 : i32
    %789 = arith.addi %4, %c1_i32_215 : i32
    %790 = arith.addi %788, %789 : i32
    %c9_i32_216 = arith.constant 9 : i32
    %791 = arith.muli %790, %c9_i32_216 : i32
    %792 = arith.index_cast %791 : i32 to index
    %793 = memref.load %arg3[%792] : memref<288xf32, #tpu.memory_space<smem>>
    %794 = vector.broadcast %793 : f32 to vector<8x128xf32>
    %795 = arith.addf %480, %794 : vector<8x128xf32>
    %c1_i32_217 = arith.constant 1 : i32
    %796 = arith.addi %791, %c1_i32_217 : i32
    %797 = arith.index_cast %796 : i32 to index
    %798 = memref.load %arg3[%797] : memref<288xf32, #tpu.memory_space<smem>>
    %799 = vector.broadcast %798 : f32 to vector<8x128xf32>
    %800 = arith.addf %482, %799 : vector<8x128xf32>
    %801 = arith.maximumf %795, %800 : vector<8x128xf32>
    %c2_i32_218 = arith.constant 2 : i32
    %802 = arith.addi %791, %c2_i32_218 : i32
    %803 = arith.index_cast %802 : i32 to index
    %804 = memref.load %arg3[%803] : memref<288xf32, #tpu.memory_space<smem>>
    %805 = vector.broadcast %804 : f32 to vector<8x128xf32>
    %806 = arith.addf %484, %805 : vector<8x128xf32>
    %807 = arith.maximumf %801, %806 : vector<8x128xf32>
    %c3_i32_219 = arith.constant 3 : i32
    %808 = arith.addi %791, %c3_i32_219 : i32
    %809 = arith.index_cast %808 : i32 to index
    %810 = memref.load %arg3[%809] : memref<288xf32, #tpu.memory_space<smem>>
    %811 = vector.broadcast %810 : f32 to vector<8x128xf32>
    %812 = arith.addf %486, %811 : vector<8x128xf32>
    %813 = arith.maximumf %807, %812 : vector<8x128xf32>
    %c4_i32_220 = arith.constant 4 : i32
    %814 = arith.addi %791, %c4_i32_220 : i32
    %815 = arith.index_cast %814 : i32 to index
    %816 = memref.load %arg3[%815] : memref<288xf32, #tpu.memory_space<smem>>
    %817 = vector.broadcast %816 : f32 to vector<8x128xf32>
    %818 = arith.addf %488, %817 : vector<8x128xf32>
    %819 = arith.maximumf %813, %818 : vector<8x128xf32>
    %c5_i32_221 = arith.constant 5 : i32
    %820 = arith.addi %791, %c5_i32_221 : i32
    %821 = arith.index_cast %820 : i32 to index
    %822 = memref.load %arg3[%821] : memref<288xf32, #tpu.memory_space<smem>>
    %823 = vector.broadcast %822 : f32 to vector<8x128xf32>
    %824 = arith.addf %490, %823 : vector<8x128xf32>
    %825 = arith.maximumf %819, %824 : vector<8x128xf32>
    %c6_i32_222 = arith.constant 6 : i32
    %826 = arith.addi %791, %c6_i32_222 : i32
    %827 = arith.index_cast %826 : i32 to index
    %828 = memref.load %arg3[%827] : memref<288xf32, #tpu.memory_space<smem>>
    %829 = vector.broadcast %828 : f32 to vector<8x128xf32>
    %830 = arith.addf %492, %829 : vector<8x128xf32>
    %831 = arith.maximumf %825, %830 : vector<8x128xf32>
    %c7_i32_223 = arith.constant 7 : i32
    %832 = arith.addi %791, %c7_i32_223 : i32
    %833 = arith.index_cast %832 : i32 to index
    %834 = memref.load %arg3[%833] : memref<288xf32, #tpu.memory_space<smem>>
    %835 = vector.broadcast %834 : f32 to vector<8x128xf32>
    %836 = arith.addf %494, %835 : vector<8x128xf32>
    %837 = arith.maximumf %831, %836 : vector<8x128xf32>
    %c8_i32_224 = arith.constant 8 : i32
    %838 = arith.addi %791, %c8_i32_224 : i32
    %839 = arith.index_cast %838 : i32 to index
    %840 = memref.load %arg3[%839] : memref<288xf32, #tpu.memory_space<smem>>
    %841 = vector.broadcast %840 : f32 to vector<8x128xf32>
    %842 = arith.addf %496, %841 : vector<8x128xf32>
    %843 = arith.maximumf %837, %842 : vector<8x128xf32>
    %844 = arith.minimumf %364, %843 : vector<8x128xf32>
    %c6_i32_225 = arith.constant 6 : i32
    %845 = arith.addi %3, %c6_i32_225 : i32
    %c4_i32_226 = arith.constant 4 : i32
    %846 = arith.muli %845, %c4_i32_226 : i32
    %c1_i32_227 = arith.constant 1 : i32
    %847 = arith.addi %4, %c1_i32_227 : i32
    %848 = arith.addi %846, %847 : i32
    %c9_i32_228 = arith.constant 9 : i32
    %849 = arith.muli %848, %c9_i32_228 : i32
    %850 = arith.index_cast %849 : i32 to index
    %851 = memref.load %arg3[%850] : memref<288xf32, #tpu.memory_space<smem>>
    %852 = vector.broadcast %851 : f32 to vector<8x128xf32>
    %853 = arith.addf %480, %852 : vector<8x128xf32>
    %c1_i32_229 = arith.constant 1 : i32
    %854 = arith.addi %849, %c1_i32_229 : i32
    %855 = arith.index_cast %854 : i32 to index
    %856 = memref.load %arg3[%855] : memref<288xf32, #tpu.memory_space<smem>>
    %857 = vector.broadcast %856 : f32 to vector<8x128xf32>
    %858 = arith.addf %482, %857 : vector<8x128xf32>
    %859 = arith.maximumf %853, %858 : vector<8x128xf32>
    %c2_i32_230 = arith.constant 2 : i32
    %860 = arith.addi %849, %c2_i32_230 : i32
    %861 = arith.index_cast %860 : i32 to index
    %862 = memref.load %arg3[%861] : memref<288xf32, #tpu.memory_space<smem>>
    %863 = vector.broadcast %862 : f32 to vector<8x128xf32>
    %864 = arith.addf %484, %863 : vector<8x128xf32>
    %865 = arith.maximumf %859, %864 : vector<8x128xf32>
    %c3_i32_231 = arith.constant 3 : i32
    %866 = arith.addi %849, %c3_i32_231 : i32
    %867 = arith.index_cast %866 : i32 to index
    %868 = memref.load %arg3[%867] : memref<288xf32, #tpu.memory_space<smem>>
    %869 = vector.broadcast %868 : f32 to vector<8x128xf32>
    %870 = arith.addf %486, %869 : vector<8x128xf32>
    %871 = arith.maximumf %865, %870 : vector<8x128xf32>
    %c4_i32_232 = arith.constant 4 : i32
    %872 = arith.addi %849, %c4_i32_232 : i32
    %873 = arith.index_cast %872 : i32 to index
    %874 = memref.load %arg3[%873] : memref<288xf32, #tpu.memory_space<smem>>
    %875 = vector.broadcast %874 : f32 to vector<8x128xf32>
    %876 = arith.addf %488, %875 : vector<8x128xf32>
    %877 = arith.maximumf %871, %876 : vector<8x128xf32>
    %c5_i32_233 = arith.constant 5 : i32
    %878 = arith.addi %849, %c5_i32_233 : i32
    %879 = arith.index_cast %878 : i32 to index
    %880 = memref.load %arg3[%879] : memref<288xf32, #tpu.memory_space<smem>>
    %881 = vector.broadcast %880 : f32 to vector<8x128xf32>
    %882 = arith.addf %490, %881 : vector<8x128xf32>
    %883 = arith.maximumf %877, %882 : vector<8x128xf32>
    %c6_i32_234 = arith.constant 6 : i32
    %884 = arith.addi %849, %c6_i32_234 : i32
    %885 = arith.index_cast %884 : i32 to index
    %886 = memref.load %arg3[%885] : memref<288xf32, #tpu.memory_space<smem>>
    %887 = vector.broadcast %886 : f32 to vector<8x128xf32>
    %888 = arith.addf %492, %887 : vector<8x128xf32>
    %889 = arith.maximumf %883, %888 : vector<8x128xf32>
    %c7_i32_235 = arith.constant 7 : i32
    %890 = arith.addi %849, %c7_i32_235 : i32
    %891 = arith.index_cast %890 : i32 to index
    %892 = memref.load %arg3[%891] : memref<288xf32, #tpu.memory_space<smem>>
    %893 = vector.broadcast %892 : f32 to vector<8x128xf32>
    %894 = arith.addf %494, %893 : vector<8x128xf32>
    %895 = arith.maximumf %889, %894 : vector<8x128xf32>
    %c8_i32_236 = arith.constant 8 : i32
    %896 = arith.addi %849, %c8_i32_236 : i32
    %897 = arith.index_cast %896 : i32 to index
    %898 = memref.load %arg3[%897] : memref<288xf32, #tpu.memory_space<smem>>
    %899 = vector.broadcast %898 : f32 to vector<8x128xf32>
    %900 = arith.addf %496, %899 : vector<8x128xf32>
    %901 = arith.maximumf %895, %900 : vector<8x128xf32>
    %902 = arith.minimumf %421, %901 : vector<8x128xf32>
    %c7_i32_237 = arith.constant 7 : i32
    %903 = arith.addi %3, %c7_i32_237 : i32
    %c4_i32_238 = arith.constant 4 : i32
    %904 = arith.muli %903, %c4_i32_238 : i32
    %c1_i32_239 = arith.constant 1 : i32
    %905 = arith.addi %4, %c1_i32_239 : i32
    %906 = arith.addi %904, %905 : i32
    %c9_i32_240 = arith.constant 9 : i32
    %907 = arith.muli %906, %c9_i32_240 : i32
    %908 = arith.index_cast %907 : i32 to index
    %909 = memref.load %arg3[%908] : memref<288xf32, #tpu.memory_space<smem>>
    %910 = vector.broadcast %909 : f32 to vector<8x128xf32>
    %911 = arith.addf %480, %910 : vector<8x128xf32>
    %c1_i32_241 = arith.constant 1 : i32
    %912 = arith.addi %907, %c1_i32_241 : i32
    %913 = arith.index_cast %912 : i32 to index
    %914 = memref.load %arg3[%913] : memref<288xf32, #tpu.memory_space<smem>>
    %915 = vector.broadcast %914 : f32 to vector<8x128xf32>
    %916 = arith.addf %482, %915 : vector<8x128xf32>
    %917 = arith.maximumf %911, %916 : vector<8x128xf32>
    %c2_i32_242 = arith.constant 2 : i32
    %918 = arith.addi %907, %c2_i32_242 : i32
    %919 = arith.index_cast %918 : i32 to index
    %920 = memref.load %arg3[%919] : memref<288xf32, #tpu.memory_space<smem>>
    %921 = vector.broadcast %920 : f32 to vector<8x128xf32>
    %922 = arith.addf %484, %921 : vector<8x128xf32>
    %923 = arith.maximumf %917, %922 : vector<8x128xf32>
    %c3_i32_243 = arith.constant 3 : i32
    %924 = arith.addi %907, %c3_i32_243 : i32
    %925 = arith.index_cast %924 : i32 to index
    %926 = memref.load %arg3[%925] : memref<288xf32, #tpu.memory_space<smem>>
    %927 = vector.broadcast %926 : f32 to vector<8x128xf32>
    %928 = arith.addf %486, %927 : vector<8x128xf32>
    %929 = arith.maximumf %923, %928 : vector<8x128xf32>
    %c4_i32_244 = arith.constant 4 : i32
    %930 = arith.addi %907, %c4_i32_244 : i32
    %931 = arith.index_cast %930 : i32 to index
    %932 = memref.load %arg3[%931] : memref<288xf32, #tpu.memory_space<smem>>
    %933 = vector.broadcast %932 : f32 to vector<8x128xf32>
    %934 = arith.addf %488, %933 : vector<8x128xf32>
    %935 = arith.maximumf %929, %934 : vector<8x128xf32>
    %c5_i32_245 = arith.constant 5 : i32
    %936 = arith.addi %907, %c5_i32_245 : i32
    %937 = arith.index_cast %936 : i32 to index
    %938 = memref.load %arg3[%937] : memref<288xf32, #tpu.memory_space<smem>>
    %939 = vector.broadcast %938 : f32 to vector<8x128xf32>
    %940 = arith.addf %490, %939 : vector<8x128xf32>
    %941 = arith.maximumf %935, %940 : vector<8x128xf32>
    %c6_i32_246 = arith.constant 6 : i32
    %942 = arith.addi %907, %c6_i32_246 : i32
    %943 = arith.index_cast %942 : i32 to index
    %944 = memref.load %arg3[%943] : memref<288xf32, #tpu.memory_space<smem>>
    %945 = vector.broadcast %944 : f32 to vector<8x128xf32>
    %946 = arith.addf %492, %945 : vector<8x128xf32>
    %947 = arith.maximumf %941, %946 : vector<8x128xf32>
    %c7_i32_247 = arith.constant 7 : i32
    %948 = arith.addi %907, %c7_i32_247 : i32
    %949 = arith.index_cast %948 : i32 to index
    %950 = memref.load %arg3[%949] : memref<288xf32, #tpu.memory_space<smem>>
    %951 = vector.broadcast %950 : f32 to vector<8x128xf32>
    %952 = arith.addf %494, %951 : vector<8x128xf32>
    %953 = arith.maximumf %947, %952 : vector<8x128xf32>
    %c8_i32_248 = arith.constant 8 : i32
    %954 = arith.addi %907, %c8_i32_248 : i32
    %955 = arith.index_cast %954 : i32 to index
    %956 = memref.load %arg3[%955] : memref<288xf32, #tpu.memory_space<smem>>
    %957 = vector.broadcast %956 : f32 to vector<8x128xf32>
    %958 = arith.addf %496, %957 : vector<8x128xf32>
    %959 = arith.maximumf %953, %958 : vector<8x128xf32>
    %960 = arith.minimumf %478, %959 : vector<8x128xf32>
    %c0_249 = arith.constant 0 : index
    %c0_250 = arith.constant 0 : index
    %c0_251 = arith.constant 0 : index
    %961 = vector.load %arg5[%c0_249, %c0_250, %c0_251] : memref<8x8x128xf32, #tpu.memory_space<vmem>>, vector<1x8x128xf32>
    %962 = vector.shape_cast %961 : vector<1x8x128xf32> to vector<8x128xf32>
    %963 = arith.minimumf %962, %554 : vector<8x128xf32>
    %c0_252 = arith.constant 0 : index
    %c0_253 = arith.constant 0 : index
    %c0_254 = arith.constant 0 : index
    %964 = vector.load %arg5[%c0_252, %c0_253, %c0_254] : memref<8x8x128xf32, #tpu.memory_space<vmem>>, vector<1x8x128xf32>
    %965 = vector.shape_cast %964 : vector<1x8x128xf32> to vector<8x128xf32>
    %966 = vector.shape_cast %963 : vector<8x128xf32> to vector<1x8x128xf32>
    tpu.vector_store %arg5[%c0_252, %c0_253, %c0_254], %966 {strides = array<i32>} : memref<8x8x128xf32, #tpu.memory_space<vmem>>, vector<1x8x128xf32>,
    %c1_255 = arith.constant 1 : index
    %c0_256 = arith.constant 0 : index
    %c0_257 = arith.constant 0 : index
    %967 = vector.load %arg5[%c1_255, %c0_256, %c0_257] : memref<8x8x128xf32, #tpu.memory_space<vmem>>, vector<1x8x128xf32>
    %968 = vector.shape_cast %967 : vector<1x8x128xf32> to vector<8x128xf32>
    %969 = arith.minimumf %968, %612 : vector<8x128xf32>
    %c1_258 = arith.constant 1 : index
    %c0_259 = arith.constant 0 : index
    %c0_260 = arith.constant 0 : index
    %970 = vector.load %arg5[%c1_258, %c0_259, %c0_260] : memref<8x8x128xf32, #tpu.memory_space<vmem>>, vector<1x8x128xf32>
    %971 = vector.shape_cast %970 : vector<1x8x128xf32> to vector<8x128xf32>
    %972 = vector.shape_cast %969 : vector<8x128xf32> to vector<1x8x128xf32>
    tpu.vector_store %arg5[%c1_258, %c0_259, %c0_260], %972 {strides = array<i32>} : memref<8x8x128xf32, #tpu.memory_space<vmem>>, vector<1x8x128xf32>,
    %c2_261 = arith.constant 2 : index
    %c0_262 = arith.constant 0 : index
    %c0_263 = arith.constant 0 : index
    %973 = vector.load %arg5[%c2_261, %c0_262, %c0_263] : memref<8x8x128xf32, #tpu.memory_space<vmem>>, vector<1x8x128xf32>
    %974 = vector.shape_cast %973 : vector<1x8x128xf32> to vector<8x128xf32>
    %975 = arith.minimumf %974, %670 : vector<8x128xf32>
    %c2_264 = arith.constant 2 : index
    %c0_265 = arith.constant 0 : index
    %c0_266 = arith.constant 0 : index
    %976 = vector.load %arg5[%c2_264, %c0_265, %c0_266] : memref<8x8x128xf32, #tpu.memory_space<vmem>>, vector<1x8x128xf32>
    %977 = vector.shape_cast %976 : vector<1x8x128xf32> to vector<8x128xf32>
    %978 = vector.shape_cast %975 : vector<8x128xf32> to vector<1x8x128xf32>
    tpu.vector_store %arg5[%c2_264, %c0_265, %c0_266], %978 {strides = array<i32>} : memref<8x8x128xf32, #tpu.memory_space<vmem>>, vector<1x8x128xf32>,
    %c3_267 = arith.constant 3 : index
    %c0_268 = arith.constant 0 : index
    %c0_269 = arith.constant 0 : index
    %979 = vector.load %arg5[%c3_267, %c0_268, %c0_269] : memref<8x8x128xf32, #tpu.memory_space<vmem>>, vector<1x8x128xf32>
    %980 = vector.shape_cast %979 : vector<1x8x128xf32> to vector<8x128xf32>
    %981 = arith.minimumf %980, %728 : vector<8x128xf32>
    %c3_270 = arith.constant 3 : index
    %c0_271 = arith.constant 0 : index
    %c0_272 = arith.constant 0 : index
    %982 = vector.load %arg5[%c3_270, %c0_271, %c0_272] : memref<8x8x128xf32, #tpu.memory_space<vmem>>, vector<1x8x128xf32>
    %983 = vector.shape_cast %982 : vector<1x8x128xf32> to vector<8x128xf32>
    %984 = vector.shape_cast %981 : vector<8x128xf32> to vector<1x8x128xf32>
    tpu.vector_store %arg5[%c3_270, %c0_271, %c0_272], %984 {strides = array<i32>} : memref<8x8x128xf32, #tpu.memory_space<vmem>>, vector<1x8x128xf32>,
    %c4_273 = arith.constant 4 : index
    %c0_274 = arith.constant 0 : index
    %c0_275 = arith.constant 0 : index
    %985 = vector.load %arg5[%c4_273, %c0_274, %c0_275] : memref<8x8x128xf32, #tpu.memory_space<vmem>>, vector<1x8x128xf32>
    %986 = vector.shape_cast %985 : vector<1x8x128xf32> to vector<8x128xf32>
    %987 = arith.minimumf %986, %786 : vector<8x128xf32>
    %c4_276 = arith.constant 4 : index
    %c0_277 = arith.constant 0 : index
    %c0_278 = arith.constant 0 : index
    %988 = vector.load %arg5[%c4_276, %c0_277, %c0_278] : memref<8x8x128xf32, #tpu.memory_space<vmem>>, vector<1x8x128xf32>
    %989 = vector.shape_cast %988 : vector<1x8x128xf32> to vector<8x128xf32>
    %990 = vector.shape_cast %987 : vector<8x128xf32> to vector<1x8x128xf32>
    tpu.vector_store %arg5[%c4_276, %c0_277, %c0_278], %990 {strides = array<i32>} : memref<8x8x128xf32, #tpu.memory_space<vmem>>, vector<1x8x128xf32>,
    %c5_279 = arith.constant 5 : index
    %c0_280 = arith.constant 0 : index
    %c0_281 = arith.constant 0 : index
    %991 = vector.load %arg5[%c5_279, %c0_280, %c0_281] : memref<8x8x128xf32, #tpu.memory_space<vmem>>, vector<1x8x128xf32>
    %992 = vector.shape_cast %991 : vector<1x8x128xf32> to vector<8x128xf32>
    %993 = arith.minimumf %992, %844 : vector<8x128xf32>
    %c5_282 = arith.constant 5 : index
    %c0_283 = arith.constant 0 : index
    %c0_284 = arith.constant 0 : index
    %994 = vector.load %arg5[%c5_282, %c0_283, %c0_284] : memref<8x8x128xf32, #tpu.memory_space<vmem>>, vector<1x8x128xf32>
    %995 = vector.shape_cast %994 : vector<1x8x128xf32> to vector<8x128xf32>
    %996 = vector.shape_cast %993 : vector<8x128xf32> to vector<1x8x128xf32>
    tpu.vector_store %arg5[%c5_282, %c0_283, %c0_284], %996 {strides = array<i32>} : memref<8x8x128xf32, #tpu.memory_space<vmem>>, vector<1x8x128xf32>,
    %c6_285 = arith.constant 6 : index
    %c0_286 = arith.constant 0 : index
    %c0_287 = arith.constant 0 : index
    %997 = vector.load %arg5[%c6_285, %c0_286, %c0_287] : memref<8x8x128xf32, #tpu.memory_space<vmem>>, vector<1x8x128xf32>
    %998 = vector.shape_cast %997 : vector<1x8x128xf32> to vector<8x128xf32>
    %999 = arith.minimumf %998, %902 : vector<8x128xf32>
    %c6_288 = arith.constant 6 : index
    %c0_289 = arith.constant 0 : index
    %c0_290 = arith.constant 0 : index
    %1000 = vector.load %arg5[%c6_288, %c0_289, %c0_290] : memref<8x8x128xf32, #tpu.memory_space<vmem>>, vector<1x8x128xf32>
    %1001 = vector.shape_cast %1000 : vector<1x8x128xf32> to vector<8x128xf32>
    %1002 = vector.shape_cast %999 : vector<8x128xf32> to vector<1x8x128xf32>
    tpu.vector_store %arg5[%c6_288, %c0_289, %c0_290], %1002 {strides = array<i32>} : memref<8x8x128xf32, #tpu.memory_space<vmem>>, vector<1x8x128xf32>,
    %c7_291 = arith.constant 7 : index
    %c0_292 = arith.constant 0 : index
    %c0_293 = arith.constant 0 : index
    %1003 = vector.load %arg5[%c7_291, %c0_292, %c0_293] : memref<8x8x128xf32, #tpu.memory_space<vmem>>, vector<1x8x128xf32>
    %1004 = vector.shape_cast %1003 : vector<1x8x128xf32> to vector<8x128xf32>
    %1005 = arith.minimumf %1004, %960 : vector<8x128xf32>
    %c7_294 = arith.constant 7 : index
    %c0_295 = arith.constant 0 : index
    %c0_296 = arith.constant 0 : index
    %1006 = vector.load %arg5[%c7_294, %c0_295, %c0_296] : memref<8x8x128xf32, #tpu.memory_space<vmem>>, vector<1x8x128xf32>
    %1007 = vector.shape_cast %1006 : vector<1x8x128xf32> to vector<8x128xf32>
    %1008 = vector.shape_cast %1005 : vector<8x128xf32> to vector<1x8x128xf32>
    tpu.vector_store %arg5[%c7_294, %c0_295, %c0_296], %1008 {strides = array<i32>} : memref<8x8x128xf32, #tpu.memory_space<vmem>>, vector<1x8x128xf32>,
    return
  }
  func.func @transform_0(%arg0: i32, %arg1: i32, %arg2: i32) -> i32 {
    %c0_i32 = arith.constant 0 : i32
    %c0_i32_0 = arith.constant 0 : i32
    return %c0_i32 : i32
  }
  func.func @transform_1(%arg0: i32, %arg1: i32, %arg2: i32) -> (i32, i32, i32, i32) {
    %c0_i32 = arith.constant 0 : i32
    %c0_i32_0 = arith.constant 0 : i32
    %c0_i32_1 = arith.constant 0 : i32
    return %c0_i32, %arg2, %arg0, %c0_i32_0 : i32, i32, i32, i32
  }
  func.func @transform_2(%arg0: i32, %arg1: i32, %arg2: i32) -> (i32, i32, i32) {
    %c0_i32 = arith.constant 0 : i32
    %c0_i32_0 = arith.constant 0 : i32
    return %arg1, %arg0, %c0_i32 : i32, i32, i32
  }
}

</mosaic_0001>

<llo_original>
// kernel: solid_conv.1
$region0: #{solid_conv.1}
  #allocation0 [shape = 'u32[]', space=smem, size = 0x4, offset = 0x4, fixed_abs, tag = 'smem constant byte address 0x4 - core index']
  #allocation1 [shape = 'u32[144,128]{1,0:T(1,128)}', space=vmem, size = 0x12000, scoped, tag = 'internal scratch']
  %s0 = inlined_call_operand.vmem [shape: f32[288], index: 0, kind: input, shape index: {}]
  %s1 = inlined_call_operand.vmem [shape: f32[9,4,8,128], index: 1, kind: input, shape index: {}]
  %s2 = inlined_call_operand.vmem [shape: f32[8,8,128], index: 2, kind: output, shape index: {}]
  %s3 = sld [smem:[#allocation0]]
  $region87: #{solid_conv.1} parent=0
    _
  %s5 = ssub.s32 1, %s3
  %s6 = scalar_select 0, %s5, %s3
  $region1: #{solid_conv.1} parent=0
    #allocation2 [shape = 'u8[1536]{0}', space=smem, size = 0x600, scoped, tag = 'input window, operand 0, single buffered']
    #allocation3 [shape = 's32[2]{0}', space=sflag, size = 0x8, scoped, tag = 'scoped memory for solid_conv.1']
    #allocation4 [shape = 'u8[147456]{0}', space=vmem, size = 0x24000, scoped, tag = 'input window, operand 1']
    %7 = vsyncpa [#allocation3], 0
    loop: start=0, step=1, limit=4
    $region2: #{solid_conv.1} parent=1 // loop_pre_header
      _
    $region3: #{solid_conv.1} parent=1 // loop_header
      %s9 = sphi 0, %s13
      %p10 = scmp.ge.s32.totalorder %s9, 4
      %s16 = sphi 0, %s35
      %s17 = sphi 0, %s31
      %s18 = sphi 0, %s27
      %s19 = sphi 0, %s16
      %s20 = sphi 0, %s17
      %s21 = sphi 0, %s18
      %s22 = sphi 0, %s19
      %s23 = sphi 0, %s20
      %s24 = sphi 0, %s21
      %s36 = sphi 0, %s36
      %s38 = sphi 0, %s36
      %s39 = sphi 0, %s38
      %s53 = sphi 0, %s39
      %s61 = sphi 0, %s63
      %s64 = sphi 0, %s61
      %s65 = sphi 0, %s64
      %s81 = sphi 0, %s65
      %s89 = sphi 0, %s91
      %s92 = sphi 0, %s89
      %s93 = sphi 0, %s92
      %s109 = sphi 0, %s93
    $region4: #{solid_conv.1} parent=1 // loop_header_branch
      %12 = sbr.rel (%p10) target = $region8
    $region5: #{solid_conv.1} parent=1 // loop_body
      %s14 = ssub.s32 %s9, 1
      %s15 = ssub.s32 %s9, 2
      %s25 = sadd.s32 1, %s18
      %p26 = scmp.ge.s32.totalorder %s25, 2
      %s27 = scalar_select %p26, 0, %s25
      %s28 = sadd.s32 1, %s17
      %s29 = scalar_select %p26, %s28, %s17
      %p30 = scmp.ge.s32.totalorder %s29, 1
      %s31 = scalar_select %p30, 0, %s29
      %s32 = sadd.s32 1, %s16
      %s33 = scalar_select %p30, %s32, %s16
      %p34 = scmp.ge.s32.totalorder %s33, 1
      %s35 = scalar_select %p34, 0, %s33
      %s37 = sadd.s32 %s36, 1
      %p40 = scmp.eq.s32.totalorder %s9, 1
      %p41 = scmp.ne.s32.totalorder %s36, %s38
      %p42 = scmp.eq.s32.totalorder %s9, 0
      %p43 = por %p41, %p42
      %p44 = scmp.ne.s32.totalorder %s36, %s38
      %p45 = scmp.eq.s32.totalorder %s14, 1
      %p46 = por %p44, %p45
      %p47 = scmp.ne.s32.totalorder %s38, %s39
      %p48 = scmp.eq.s32.totalorder %s14, 0
      %p49 = por %p47, %p48
      %p50 = scmp.ne.s32.totalorder %s38, %s39
      %p51 = scmp.eq.s32.totalorder %s15, 1
      %p52 = por %p50, %p51
      %p54 = scmp.ne.s32.totalorder %s39, %s53
      %p55 = scmp.eq.s32.totalorder %s15, 0
      %p56 = por %p54, %p55
      %s57 = ssub.s32 %s18, %s27
      %s58 = ssub.s32 %s16, %s35
      %s59 = sor.u32 %s57, %s58
      %p60 = scmp.eq.s32.totalorder %s59, 0
      %s62 = sadd.s32 %s61, 1
      %s63 = scalar_select %p60, %s61, %s62
      %p66 = pneg %p60
      %p67 = scmp.eq.s32.totalorder %s9, 1
      %p68 = por %p66, %p67
      %p69 = scmp.ne.s32.totalorder %s61, %s64
      %p70 = scmp.eq.s32.totalorder %s9, 0
      %p71 = por %p69, %p70
      %p72 = scmp.ne.s32.totalorder %s61, %s64
      %p73 = scmp.eq.s32.totalorder %s14, 1
      %p74 = por %p72, %p73
      %p75 = scmp.ne.s32.totalorder %s64, %s65
      %p76 = scmp.eq.s32.totalorder %s14, 0
      %p77 = por %p75, %p76
      %p78 = scmp.ne.s32.totalorder %s64, %s65
      %p79 = scmp.eq.s32.totalorder %s15, 1
      %p80 = por %p78, %p79
      %p82 = scmp.ne.s32.totalorder %s65, %s81
      %p83 = scmp.eq.s32.totalorder %s15, 0
      %p84 = por %p82, %p83
      %s85 = ssub.s32 %s17, %s31
      %s86 = ssub.s32 %s16, %s35
      %s87 = sor.u32 %s85, %s86
      %p88 = scmp.eq.s32.totalorder %s87, 0
      %s90 = sadd.s32 %s89, 1
      %s91 = scalar_select %p88, %s89, %s90
      %p94 = pneg %p88
      %p95 = scmp.eq.s32.totalorder %s9, 1
      %p96 = por %p94, %p95
      %p97 = scmp.ne.s32.totalorder %s89, %s92
      %p98 = scmp.eq.s32.totalorder %s9, 0
      %p99 = por %p97, %p98
      %p100 = scmp.ne.s32.totalorder %s89, %s92
      %p101 = scmp.eq.s32.totalorder %s14, 1
      %p102 = por %p100, %p101
      %p103 = scmp.ne.s32.totalorder %s92, %s93
      %p104 = scmp.eq.s32.totalorder %s14, 0
      %p105 = por %p103, %p104
      %p106 = scmp.ne.s32.totalorder %s92, %s93
      %p107 = scmp.eq.s32.totalorder %s15, 1
      %p108 = por %p106, %p107
      %p110 = scmp.ne.s32.totalorder %s93, %s109
      %p111 = scmp.eq.s32.totalorder %s15, 0
      %p112 = por %p110, %p111
      %p113 = scmp.le.s32.totalorder 1, %s9
      %p114 = scmp.lt.s32.totalorder %s9, 3
      %p115 = pnand %p113, %p114
      %p116 = pneg %p115
      // Predicated region
      $region9: #{solid_conv.1} parent=5 // pred_check
        _
      $region10: #{solid_conv.1} parent=5 // pred_check_branch
        %118 = sbr.rel (%p115) target = $region12
      $region11: #{solid_conv.1} parent=5 // pred_region
        %s119 = ssub.s32 %s9, 1
        // Predicated region
        $region13: #{solid_conv.1} parent=11 // pred_check
          %p120 = pneg %p49
        $region14: #{solid_conv.1} parent=11 // pred_check_branch
          %122 = sbr.rel (%p120) target = $region16
        $region15: #{solid_conv.1} parent=11 // pred_region
          %s124 = ssub.s32 48, 48
          %125 = vsyncadd [#allocation3], %s124
          %s127 = sshll.u32 %s0, 4
          %s128 = int_to_ptr.vmem [resolvable:$true] %s127
          %130 = dma.vmem_to_smem %s128, 48, [#allocation2], [#allocation3]
        $region16: #{solid_conv.1} parent=11 // pred_fallthru
          _
      $region12: #{solid_conv.1} parent=5 // pred_fallthru
        _
      %p131 = scmp.lt.s32.totalorder %s9, 2
      // Predicated region
      $region17: #{solid_conv.1} parent=5 // pred_check
        %p132 = pneg %p131
      $region18: #{solid_conv.1} parent=5 // pred_check_branch
        %134 = sbr.rel (%p132) target = $region20
      $region19: #{solid_conv.1} parent=5 // pred_region
        // Predicated region
        $region21: #{solid_conv.1} parent=19 // pred_check
          %p135 = pneg %p71
        $region22: #{solid_conv.1} parent=19 // pred_check_branch
          %137 = sbr.rel (%p135) target = $region24
        $region23: #{solid_conv.1} parent=19 // pred_region
          %s138 = sand.u32 %s61, 1
          %s139 = sand.u32 %s61, 1
          %s140 = smul.addr %s139, 144
          %s141 = scalar_lea.vmem [#allocation4], %s140
          %s142 = smul.u32 2, %s18
          %s143 = sadd.s32 %s16, %s142
          %s144 = smul.addr %s143, 8
          %s145 = scalar_lea.vmem %s1, %s144
          // Predicated region
          $region25: #{solid_conv.1} parent=23 // pred_check
            _
          $region26: #{solid_conv.1} parent=23 // pred_check_branch
            %147 = sbr.rel (0) target = $region28
          $region27: #{solid_conv.1} parent=23 // pred_region
            // Predicated region
            $region29: #{solid_conv.1} parent=27 // pred_check
              _
            $region30: #{solid_conv.1} parent=27 // pred_check_branch
              %149 = sbr.rel (0) target = $region32
            $region31: #{solid_conv.1} parent=27 // pred_region
              // Predicated region
              $region44: #{solid_conv.1} parent=31 // pred_check
                _
              $region45: #{solid_conv.1} parent=31 // pred_check_branch
                %198 = sbr.rel (0) target = $region47
              $region46: #{solid_conv.1} parent=31 // pred_region
                loop: start=0, step=1, limit=1
                $region48: #{solid_conv.1} parent=46 // loop_pre_header
                  _
                $region49: #{solid_conv.1} parent=46 // loop_header
                  %s200 = sphi 0, %s204
                  %p201 = scmp.ge.s32.totalorder %s200, 1
                  %s205 = sphi %s145, %s145
                  %s206 = sphi %s141, %s141
                $region50: #{solid_conv.1} parent=46 // loop_header_branch
                  %203 = sbr.rel (%p201) target = $region54
                $region51: #{solid_conv.1} parent=46 // loop_body
                  %v207 = vld [vmem:[%s205] sm:$0xff]
                  %208 = vst [vmem:[%s206] sm:$0xff] %v207
                  %v209 = vld [vmem:[%s205 + $0x8] sm:$0xff]
                  %210 = vst [vmem:[%s206 + $0x8] sm:$0xff] %v209
                  %v211 = vld [vmem:[%s205 + $0x20] sm:$0xff]
                  %212 = vst [vmem:[%s206 + $0x10] sm:$0xff] %v211
                  %v213 = vld [vmem:[%s205 + $0x28] sm:$0xff]
                  %214 = vst [vmem:[%s206 + $0x18] sm:$0xff] %v213
                  %v215 = vld [vmem:[%s205 + $0x40] sm:$0xff]
                  %216 = vst [vmem:[%s206 + $0x20] sm:$0xff] %v215
                  %v217 = vld [vmem:[%s205 + $0x48] sm:$0xff]
                  %218 = vst [vmem:[%s206 + $0x28] sm:$0xff] %v217
                  %v219 = vld [vmem:[%s205 + $0x60] sm:$0xff]
                  %220 = vst [vmem:[%s206 + $0x30] sm:$0xff] %v219
                  %v221 = vld [vmem:[%s205 + $0x68] sm:$0xff]
                  %222 = vst [vmem:[%s206 + $0x38] sm:$0xff] %v221
                  %v223 = vld [vmem:[%s205 + $0x80] sm:$0xff]
                  %224 = vst [vmem:[%s206 + $0x40] sm:$0xff] %v223
                  %v225 = vld [vmem:[%s205 + $0x88] sm:$0xff]
                  %226 = vst [vmem:[%s206 + $0x48] sm:$0xff] %v225
                  %v227 = vld [vmem:[%s205 + $0xa0] sm:$0xff]
                  %228 = vst [vmem:[%s206 + $0x50] sm:$0xff] %v227
                  %v229 = vld [vmem:[%s205 + $0xa8] sm:$0xff]
                  %230 = vst [vmem:[%s206 + $0x58] sm:$0xff] %v229
                  %v231 = vld [vmem:[%s205 + $0xc0] sm:$0xff]
                  %232 = vst [vmem:[%s206 + $0x60] sm:$0xff] %v231
                  %v233 = vld [vmem:[%s205 + $0xc8] sm:$0xff]
                  %234 = vst [vmem:[%s206 + $0x68] sm:$0xff] %v233
                  %v235 = vld [vmem:[%s205 + $0xe0] sm:$0xff]
                  %236 = vst [vmem:[%s206 + $0x70] sm:$0xff] %v235
                  %v237 = vld [vmem:[%s205 + $0xe8] sm:$0xff]
                  %238 = vst [vmem:[%s206 + $0x78] sm:$0xff] %v237
                  %v239 = vld [vmem:[%s205 + $0x100] sm:$0xff]
                  %240 = vst [vmem:[%s206 + $0x80] sm:$0xff] %v239
                  %v241 = vld [vmem:[%s205 + $0x108] sm:$0xff]
                  %242 = vst [vmem:[%s206 + $0x88] sm:$0xff] %v241
                $region52: #{solid_conv.1} parent=46 // loop_footer
                  %s204 = sadd.s32 1, %s200
                $region53: #{solid_conv.1} parent=46 // loop_footer_branch
                  %199 = sbr.rel target = $region49
                $region54: #{solid_conv.1} parent=46 // loop_exit
                  _
              $region47: #{solid_conv.1} parent=31 // pred_fallthru
                _
              // Predicated region
              $region55: #{solid_conv.1} parent=31 // pred_check
                _
              $region56: #{solid_conv.1} parent=31 // pred_check_branch
                %244 = sbr.rel target = $region58
              $region57: #{solid_conv.1} parent=31 // pred_region
                _
              $region58: #{solid_conv.1} parent=31 // pred_fallthru
                _
            $region32: #{solid_conv.1} parent=27 // pred_fallthru
              _
            // Predicated region
            $region33: #{solid_conv.1} parent=27 // pred_check
              _
            $region34: #{solid_conv.1} parent=27 // pred_check_branch
              %151 = sbr.rel target = $region36
            $region35: #{solid_conv.1} parent=27 // pred_region
              loop: start=0, step=1, limit=1
              $region37: #{solid_conv.1} parent=35 // loop_pre_header
                _
              $region38: #{solid_conv.1} parent=35 // loop_header
                %s154 = sphi 0, %s158
                %p155 = scmp.ge.s32.totalorder %s154, 1
                %s159 = sphi %s145, %s145
                %s160 = sphi %s141, %s141
              $region39: #{solid_conv.1} parent=35 // loop_header_branch
                %157 = sbr.rel (%p155) target = $region43
              $region40: #{solid_conv.1} parent=35 // loop_body
                %v161 = vld [vmem:[%s159] sm:$0xff]
                %162 = vst [vmem:[%s160] sm:$0xff] %v161
                %v163 = vld [vmem:[%s159 + $0x8] sm:$0xff]
                %164 = vst [vmem:[%s160 + $0x8] sm:$0xff] %v163
                %v165 = vld [vmem:[%s159 + $0x20] sm:$0xff]
                %166 = vst [vmem:[%s160 + $0x10] sm:$0xff] %v165
                %v167 = vld [vmem:[%s159 + $0x28] sm:$0xff]
                %168 = vst [vmem:[%s160 + $0x18] sm:$0xff] %v167
                %v169 = vld [vmem:[%s159 + $0x40] sm:$0xff]
                %170 = vst [vmem:[%s160 + $0x20] sm:$0xff] %v169
                %v171 = vld [vmem:[%s159 + $0x48] sm:$0xff]
                %172 = vst [vmem:[%s160 + $0x28] sm:$0xff] %v171
                %v173 = vld [vmem:[%s159 + $0x60] sm:$0xff]
                %174 = vst [vmem:[%s160 + $0x30] sm:$0xff] %v173
                %v175 = vld [vmem:[%s159 + $0x68] sm:$0xff]
                %176 = vst [vmem:[%s160 + $0x38] sm:$0xff] %v175
                %v177 = vld [vmem:[%s159 + $0x80] sm:$0xff]
                %178 = vst [vmem:[%s160 + $0x40] sm:$0xff] %v177
                %v179 = vld [vmem:[%s159 + $0x88] sm:$0xff]
                %180 = vst [vmem:[%s160 + $0x48] sm:$0xff] %v179
                %v181 = vld [vmem:[%s159 + $0xa0] sm:$0xff]
                %182 = vst [vmem:[%s160 + $0x50] sm:$0xff] %v181
                %v183 = vld [vmem:[%s159 + $0xa8] sm:$0xff]
                %184 = vst [vmem:[%s160 + $0x58] sm:$0xff] %v183
                %v185 = vld [vmem:[%s159 + $0xc0] sm:$0xff]
                %186 = vst [vmem:[%s160 + $0x60] sm:$0xff] %v185
                %v187 = vld [vmem:[%s159 + $0xc8] sm:$0xff]
                %188 = vst [vmem:[%s160 + $0x68] sm:$0xff] %v187
                %v189 = vld [vmem:[%s159 + $0xe0] sm:$0xff]
                %190 = vst [vmem:[%s160 + $0x70] sm:$0xff] %v189
                %v191 = vld [vmem:[%s159 + $0xe8] sm:$0xff]
                %192 = vst [vmem:[%s160 + $0x78] sm:$0xff] %v191
                %v193 = vld [vmem:[%s159 + $0x100] sm:$0xff]
                %194 = vst [vmem:[%s160 + $0x80] sm:$0xff] %v193
                %v195 = vld [vmem:[%s159 + $0x108] sm:$0xff]
                %196 = vst [vmem:[%s160 + $0x88] sm:$0xff] %v195
              $region41: #{solid_conv.1} parent=35 // loop_footer
                %s158 = sadd.s32 1, %s154
              $region42: #{solid_conv.1} parent=35 // loop_footer_branch
                %153 = sbr.rel target = $region38
              $region43: #{solid_conv.1} parent=35 // loop_exit
                _
            $region36: #{solid_conv.1} parent=27 // pred_fallthru
              _
          $region28: #{solid_conv.1} parent=23 // pred_fallthru
            _
          %245 = vnop
        $region24: #{solid_conv.1} parent=19 // pred_fallthru
          _
      $region20: #{solid_conv.1} parent=5 // pred_fallthru
        _
      %p246 = scmp.le.s32.totalorder 1, %s9
      %p247 = scmp.lt.s32.totalorder %s9, 3
      %p248 = pnand %p246, %p247
      %p249 = pneg %p248
      // Predicated region
      $region59: #{solid_conv.1} parent=5 // pred_check
        _
      $region60: #{solid_conv.1} parent=5 // pred_check_branch
        %251 = sbr.rel (%p248) target = $region62
      $region61: #{solid_conv.1} parent=5 // pred_region
        %s252 = ssub.s32 %s9, 1
        // Predicated region
        $region63: #{solid_conv.1} parent=61 // pred_check
          %p253 = pneg %p49
        $region64: #{solid_conv.1} parent=61 // pred_check_branch
          %255 = sbr.rel (%p253) target = $region66
        $region65: #{solid_conv.1} parent=61 // pred_region
          %256 = dma.done [#allocation3], 48
        $region66: #{solid_conv.1} parent=61 // pred_fallthru
          _
        %s257 = sand.u32 %s64, 1
        %s258 = sand.u32 %s64, 1
        %s259 = smul.addr %s258, 144
        %s260 = scalar_lea.vmem [#allocation4], %s259
        // Predicated region
        $region67: #{solid_conv.1} parent=61 // pred_check
          %p261 = pneg %p77
        $region68: #{solid_conv.1} parent=61 // pred_check_branch
          %263 = sbr.rel (%p261) target = $region70
        $region69: #{solid_conv.1} parent=61 // pred_region
          _
        $region70: #{solid_conv.1} parent=61 // pred_fallthru
          _
        %264 = sfence
        %p265 = pneg %p49
        %p266 = pneg %p46
        %s267 = sand.u32 %s64, 1
        %s268 = sand.u32 %s64, 1
        %s269 = smul.addr %s268, 144
        %s270 = scalar_lea.vmem [#allocation4], %s269
        %p271 = pneg %p77
        %p272 = pneg %p74
        %p273 = pneg %p105
        %p274 = pneg %p102
        %s275 = smul.u32 8, %s20
        %p276 = scmp.lt.s32.totalorder %s275, 7
        %s277 = scalar_select %p276, %s275, 7
        %p278 = scmp.lt.s32.totalorder %s19, 0
        %s279 = scalar_select %p278, %s19, 0
        %s280 = sadd.s32 %s279, %s277
        %s281 = smul.addr %s280, 8
        %s282 = scalar_lea.vmem %s2, %s281
        %s283 = smul.u32 2, %s21
        %s284 = smul.u32 8, %s20
        %p285 = scmp.lt.s32.totalorder %s284, 7
        %s286 = scalar_select %p285, %s284, 7
        %p287 = scmp.lt.s32.totalorder %s19, 0
        %s288 = scalar_select %p287, %s19, 0
        %s289 = sadd.s32 %s288, %s286
        %s290 = smul.addr %s289, 8
        %s291 = scalar_lea.vmem %s2, %s290
        %s292 = smul.u32 8, %s20
        %p293 = scmp.eq.s32.totalorder %s21, 0
        // Predicated region
        $region71: #{solid_conv.1} parent=61 // pred_check
          %p294 = pneg %p293
        $region72: #{solid_conv.1} parent=61 // pred_check_branch
          %296 = sbr.rel (%p294) target = $region74
        $region73: #{solid_conv.1} parent=61 // pred_region
          %297 = vst [vmem:[%s291] sm:$0xff] inf
          %298 = vst [vmem:[%s291 + $0x8] sm:$0xff] inf
          %299 = vst [vmem:[%s291 + $0x10] sm:$0xff] inf
          %300 = vst [vmem:[%s291 + $0x18] sm:$0xff] inf
          %301 = vst [vmem:[%s291 + $0x20] sm:$0xff] inf
          %302 = vst [vmem:[%s291 + $0x28] sm:$0xff] inf
          %303 = vst [vmem:[%s291 + $0x30] sm:$0xff] inf
          %304 = vst [vmem:[%s291 + $0x38] sm:$0xff] inf
        $region74: #{solid_conv.1} parent=61 // pred_fallthru
          _
        %s305 = smul.u32 %s20, 8
        %s306 = smul.u32 %s21, 2
        %v307 = vld [vmem:[%s260] sm:$0xff]
        %s308 = scalar_lea.vmem %s260, 16 [#allocation4]
        %v309 = vld [vmem:[%s308] sm:$0xff]
        %s310 = scalar_lea.vmem %s260, 32 [#allocation4]
        %v311 = vld [vmem:[%s310] sm:$0xff]
        %s312 = scalar_lea.vmem %s260, 48 [#allocation4]
        %v313 = vld [vmem:[%s312] sm:$0xff]
        %s314 = scalar_lea.vmem %s260, 64 [#allocation4]
        %v315 = vld [vmem:[%s314] sm:$0xff]
        %s316 = scalar_lea.vmem %s260, 80 [#allocation4]
        %v317 = vld [vmem:[%s316] sm:$0xff]
        %s318 = scalar_lea.vmem %s260, 96 [#allocation4]
        %v319 = vld [vmem:[%s318] sm:$0xff]
        %s320 = scalar_lea.vmem %s260, 112 [#allocation4]
        %v321 = vld [vmem:[%s320] sm:$0xff]
        %s322 = scalar_lea.vmem %s260, 128 [#allocation4]
        %v323 = vld [vmem:[%s322] sm:$0xff]
        %s324 = smul.u32 %s20, 32
        %s325 = sadd.s32 %s324, %s306
        %s326 = smul.u32 %s325, 9
        %s327 = sld [smem:[#allocation2 + %s326]]
        %v328 = vstv %s327
        %v329 = vadd.f32 %v307, %v328
        %s330 = sadd.s32 %s326, 1
        %s331 = sld [smem:[#allocation2 + %s330]]
        %v332 = vstv %s331
        %v333 = vadd.f32 %v309, %v332
        %v334 = vmax.f32 %v329, %v333
        %s335 = sadd.s32 %s326, 2
        %s336 = sld [smem:[#allocation2 + %s335]]
        %v337 = vstv %s336
        %v338 = vadd.f32 %v311, %v337
        %v339 = vmax.f32 %v334, %v338
        %s340 = sadd.s32 %s326, 3
        %s341 = sld [smem:[#allocation2 + %s340]]
        %v342 = vstv %s341
        %v343 = vadd.f32 %v313, %v342
        %v344 = vmax.f32 %v339, %v343
        %s345 = sadd.s32 %s326, 4
        %s346 = sld [smem:[#allocation2 + %s345]]
        %v347 = vstv %s346
        %v348 = vadd.f32 %v315, %v347
        %v349 = vmax.f32 %v344, %v348
        %s350 = sadd.s32 %s326, 5
        %s351 = sld [smem:[#allocation2 + %s350]]
        %v352 = vstv %s351
        %v353 = vadd.f32 %v317, %v352
        %v354 = vmax.f32 %v349, %v353
        %s355 = sadd.s32 %s326, 6
        %s356 = sld [smem:[#allocation2 + %s355]]
        %v357 = vstv %s356
        %v358 = vadd.f32 %v319, %v357
        %v359 = vmax.f32 %v354, %v358
        %s360 = sadd.s32 %s326, 7
        %s361 = sld [smem:[#allocation2 + %s360]]
        %v362 = vstv %s361
        %v363 = vadd.f32 %v321, %v362
        %v364 = vmax.f32 %v359, %v363
        %s365 = sadd.s32 %s326, 8
        %s366 = sld [smem:[#allocation2 + %s365]]
        %v367 = vstv %s366
        %v368 = vadd.f32 %v323, %v367
        %v369 = vmax.f32 %v364, %v368
        %s370 = sadd.s32 %s305, 1
        %s371 = smul.u32 %s370, 4
        %s372 = sadd.s32 %s371, %s306
        %s373 = smul.u32 %s372, 9
        %s374 = sld [smem:[#allocation2 + %s373]]
        %v375 = vstv %s374
        %v376 = vadd.f32 %v307, %v375
        %s377 = sadd.s32 %s373, 1
        %s378 = sld [smem:[#allocation2 + %s377]]
        %v379 = vstv %s378
        %v380 = vadd.f32 %v309, %v379
        %v381 = vmax.f32 %v376, %v380
        %s382 = sadd.s32 %s373, 2
        %s383 = sld [smem:[#allocation2 + %s382]]
        %v384 = vstv %s383
        %v385 = vadd.f32 %v311, %v384
        %v386 = vmax.f32 %v381, %v385
        %s387 = sadd.s32 %s373, 3
        %s388 = sld [smem:[#allocation2 + %s387]]
        %v389 = vstv %s388
        %v390 = vadd.f32 %v313, %v389
        %v391 = vmax.f32 %v386, %v390
        %s392 = sadd.s32 %s373, 4
        %s393 = sld [smem:[#allocation2 + %s392]]
        %v394 = vstv %s393
        %v395 = vadd.f32 %v315, %v394
        %v396 = vmax.f32 %v391, %v395
        %s397 = sadd.s32 %s373, 5
        %s398 = sld [smem:[#allocation2 + %s397]]
        %v399 = vstv %s398
        %v400 = vadd.f32 %v317, %v399
        %v401 = vmax.f32 %v396, %v400
        %s402 = sadd.s32 %s373, 6
        %s403 = sld [smem:[#allocation2 + %s402]]
        %v404 = vstv %s403
        %v405 = vadd.f32 %v319, %v404
        %v406 = vmax.f32 %v401, %v405
        %s407 = sadd.s32 %s373, 7
        %s408 = sld [smem:[#allocation2 + %s407]]
        %v409 = vstv %s408
        %v410 = vadd.f32 %v321, %v409
        %v411 = vmax.f32 %v406, %v410
        %s412 = sadd.s32 %s373, 8
        %s413 = sld [smem:[#allocation2 + %s412]]
        %v414 = vstv %s413
        %v415 = vadd.f32 %v323, %v414
        %v416 = vmax.f32 %v411, %v415
        %s417 = sadd.s32 %s305, 2
        %s418 = smul.u32 %s417, 4
        %s419 = sadd.s32 %s418, %s306
        %s420 = smul.u32 %s419, 9
        %s421 = sld [smem:[#allocation2 + %s420]]
        %v422 = vstv %s421
        %v423 = vadd.f32 %v307, %v422
        %s424 = sadd.s32 %s420, 1
        %s425 = sld [smem:[#allocation2 + %s424]]
        %v426 = vstv %s425
        %v427 = vadd.f32 %v309, %v426
        %v428 = vmax.f32 %v423, %v427
        %s429 = sadd.s32 %s420, 2
        %s430 = sld [smem:[#allocation2 + %s429]]
        %v431 = vstv %s430
        %v432 = vadd.f32 %v311, %v431
        %v433 = vmax.f32 %v428, %v432
        %s434 = sadd.s32 %s420, 3
        %s435 = sld [smem:[#allocation2 + %s434]]
        %v436 = vstv %s435
        %v437 = vadd.f32 %v313, %v436
        %v438 = vmax.f32 %v433, %v437
        %s439 = sadd.s32 %s420, 4
        %s440 = sld [smem:[#allocation2 + %s439]]
        %v441 = vstv %s440
        %v442 = vadd.f32 %v315, %v441
        %v443 = vmax.f32 %v438, %v442
        %s444 = sadd.s32 %s420, 5
        %s445 = sld [smem:[#allocation2 + %s444]]
        %v446 = vstv %s445
        %v447 = vadd.f32 %v317, %v446
        %v448 = vmax.f32 %v443, %v447
        %s449 = sadd.s32 %s420, 6
        %s450 = sld [smem:[#allocation2 + %s449]]
        %v451 = vstv %s450
        %v452 = vadd.f32 %v319, %v451
        %v453 = vmax.f32 %v448, %v452
        %s454 = sadd.s32 %s420, 7
        %s455 = sld [smem:[#allocation2 + %s454]]
        %v456 = vstv %s455
        %v457 = vadd.f32 %v321, %v456
        %v458 = vmax.f32 %v453, %v457
        %s459 = sadd.s32 %s420, 8
        %s460 = sld [smem:[#allocation2 + %s459]]
        %v461 = vstv %s460
        %v462 = vadd.f32 %v323, %v461
        %v463 = vmax.f32 %v458, %v462
        %s464 = sadd.s32 %s305, 3
        %s465 = smul.u32 %s464, 4
        %s466 = sadd.s32 %s465, %s306
        %s467 = smul.u32 %s466, 9
        %s468 = sld [smem:[#allocation2 + %s467]]
        %v469 = vstv %s468
        %v470 = vadd.f32 %v307, %v469
        %s471 = sadd.s32 %s467, 1
        %s472 = sld [smem:[#allocation2 + %s471]]
        %v473 = vstv %s472
        %v474 = vadd.f32 %v309, %v473
        %v475 = vmax.f32 %v470, %v474
        %s476 = sadd.s32 %s467, 2
        %s477 = sld [smem:[#allocation2 + %s476]]
        %v478 = vstv %s477
        %v479 = vadd.f32 %v311, %v478
        %v480 = vmax.f32 %v475, %v479
        %s481 = sadd.s32 %s467, 3
        %s482 = sld [smem:[#allocation2 + %s481]]
        %v483 = vstv %s482
        %v484 = vadd.f32 %v313, %v483
        %v485 = vmax.f32 %v480, %v484
        %s486 = sadd.s32 %s467, 4
        %s487 = sld [smem:[#allocation2 + %s486]]
        %v488 = vstv %s487
        %v489 = vadd.f32 %v315, %v488
        %v490 = vmax.f32 %v485, %v489
        %s491 = sadd.s32 %s467, 5
        %s492 = sld [smem:[#allocation2 + %s491]]
        %v493 = vstv %s492
        %v494 = vadd.f32 %v317, %v493
        %v495 = vmax.f32 %v490, %v494
        %s496 = sadd.s32 %s467, 6
        %s497 = sld [smem:[#allocation2 + %s496]]
        %v498 = vstv %s497
        %v499 = vadd.f32 %v319, %v498
        %v500 = vmax.f32 %v495, %v499
        %s501 = sadd.s32 %s467, 7
        %s502 = sld [smem:[#allocation2 + %s501]]
        %v503 = vstv %s502
        %v504 = vadd.f32 %v321, %v503
        %v505 = vmax.f32 %v500, %v504
        %s506 = sadd.s32 %s467, 8
        %s507 = sld [smem:[#allocation2 + %s506]]
        %v508 = vstv %s507
        %v509 = vadd.f32 %v323, %v508
        %v510 = vmax.f32 %v505, %v509
        %s511 = sadd.s32 %s305, 4
        %s512 = smul.u32 %s511, 4
        %s513 = sadd.s32 %s512, %s306
        %s514 = smul.u32 %s513, 9
        %s515 = sld [smem:[#allocation2 + %s514]]
        %v516 = vstv %s515
        %v517 = vadd.f32 %v307, %v516
        %s518 = sadd.s32 %s514, 1
        %s519 = sld [smem:[#allocation2 + %s518]]
        %v520 = vstv %s519
        %v521 = vadd.f32 %v309, %v520
        %v522 = vmax.f32 %v517, %v521
        %s523 = sadd.s32 %s514, 2
        %s524 = sld [smem:[#allocation2 + %s523]]
        %v525 = vstv %s524
        %v526 = vadd.f32 %v311, %v525
        %v527 = vmax.f32 %v522, %v526
        %s528 = sadd.s32 %s514, 3
        %s529 = sld [smem:[#allocation2 + %s528]]
        %v530 = vstv %s529
        %v531 = vadd.f32 %v313, %v530
        %v532 = vmax.f32 %v527, %v531
        %s533 = sadd.s32 %s514, 4
        %s534 = sld [smem:[#allocation2 + %s533]]
        %v535 = vstv %s534
        %v536 = vadd.f32 %v315, %v535
        %v537 = vmax.f32 %v532, %v536
        %s538 = sadd.s32 %s514, 5
        %s539 = sld [smem:[#allocation2 + %s538]]
        %v540 = vstv %s539
        %v541 = vadd.f32 %v317, %v540
        %v542 = vmax.f32 %v537, %v541
        %s543 = sadd.s32 %s514, 6
        %s544 = sld [smem:[#allocation2 + %s543]]
        %v545 = vstv %s544
        %v546 = vadd.f32 %v319, %v545
        %v547 = vmax.f32 %v542, %v546
        %s548 = sadd.s32 %s514, 7
        %s549 = sld [smem:[#allocation2 + %s548]]
        %v550 = vstv %s549
        %v551 = vadd.f32 %v321, %v550
        %v552 = vmax.f32 %v547, %v551
        %s553 = sadd.s32 %s514, 8
        %s554 = sld [smem:[#allocation2 + %s553]]
        %v555 = vstv %s554
        %v556 = vadd.f32 %v323, %v555
        %v557 = vmax.f32 %v552, %v556
        %s558 = sadd.s32 %s305, 5
        %s559 = smul.u32 %s558, 4
        %s560 = sadd.s32 %s559, %s306
        %s561 = smul.u32 %s560, 9
        %s562 = sld [smem:[#allocation2 + %s561]]
        %v563 = vstv %s562
        %v564 = vadd.f32 %v307, %v563
        %s565 = sadd.s32 %s561, 1
        %s566 = sld [smem:[#allocation2 + %s565]]
        %v567 = vstv %s566
        %v568 = vadd.f32 %v309, %v567
        %v569 = vmax.f32 %v564, %v568
        %s570 = sadd.s32 %s561, 2
        %s571 = sld [smem:[#allocation2 + %s570]]
        %v572 = vstv %s571
        %v573 = vadd.f32 %v311, %v572
        %v574 = vmax.f32 %v569, %v573
        %s575 = sadd.s32 %s561, 3
        %s576 = sld [smem:[#allocation2 + %s575]]
        %v577 = vstv %s576
        %v578 = vadd.f32 %v313, %v577
        %v579 = vmax.f32 %v574, %v578
        %s580 = sadd.s32 %s561, 4
        %s581 = sld [smem:[#allocation2 + %s580]]
        %v582 = vstv %s581
        %v583 = vadd.f32 %v315, %v582
        %v584 = vmax.f32 %v579, %v583
        %s585 = sadd.s32 %s561, 5
        %s586 = sld [smem:[#allocation2 + %s585]]
        %v587 = vstv %s586
        %v588 = vadd.f32 %v317, %v587
        %v589 = vmax.f32 %v584, %v588
        %s590 = sadd.s32 %s561, 6
        %s591 = sld [smem:[#allocation2 + %s590]]
        %v592 = vstv %s591
        %v593 = vadd.f32 %v319, %v592
        %v594 = vmax.f32 %v589, %v593
        %s595 = sadd.s32 %s561, 7
        %s596 = sld [smem:[#allocation2 + %s595]]
        %v597 = vstv %s596
        %v598 = vadd.f32 %v321, %v597
        %v599 = vmax.f32 %v594, %v598
        %s600 = sadd.s32 %s561, 8
        %s601 = sld [smem:[#allocation2 + %s600]]
        %v602 = vstv %s601
        %v603 = vadd.f32 %v323, %v602
        %v604 = vmax.f32 %v599, %v603
        %s605 = sadd.s32 %s305, 6
        %s606 = smul.u32 %s605, 4
        %s607 = sadd.s32 %s606, %s306
        %s608 = smul.u32 %s607, 9
        %s609 = sld [smem:[#allocation2 + %s608]]
        %v610 = vstv %s609
        %v611 = vadd.f32 %v307, %v610
        %s612 = sadd.s32 %s608, 1
        %s613 = sld [smem:[#allocation2 + %s612]]
        %v614 = vstv %s613
        %v615 = vadd.f32 %v309, %v614
        %v616 = vmax.f32 %v611, %v615
        %s617 = sadd.s32 %s608, 2
        %s618 = sld [smem:[#allocation2 + %s617]]
        %v619 = vstv %s618
        %v620 = vadd.f32 %v311, %v619
        %v621 = vmax.f32 %v616, %v620
        %s622 = sadd.s32 %s608, 3
        %s623 = sld [smem:[#allocation2 + %s622]]
        %v624 = vstv %s623
        %v625 = vadd.f32 %v313, %v624
        %v626 = vmax.f32 %v621, %v625
        %s627 = sadd.s32 %s608, 4
        %s628 = sld [smem:[#allocation2 + %s627]]
        %v629 = vstv %s628
        %v630 = vadd.f32 %v315, %v629
        %v631 = vmax.f32 %v626, %v630
        %s632 = sadd.s32 %s608, 5
        %s633 = sld [smem:[#allocation2 + %s632]]
        %v634 = vstv %s633
        %v635 = vadd.f32 %v317, %v634
        %v636 = vmax.f32 %v631, %v635
        %s637 = sadd.s32 %s608, 6
        %s638 = sld [smem:[#allocation2 + %s637]]
        %v639 = vstv %s638
        %v640 = vadd.f32 %v319, %v639
        %v641 = vmax.f32 %v636, %v640
        %s642 = sadd.s32 %s608, 7
        %s643 = sld [smem:[#allocation2 + %s642]]
        %v644 = vstv %s643
        %v645 = vadd.f32 %v321, %v644
        %v646 = vmax.f32 %v641, %v645
        %s647 = sadd.s32 %s608, 8
        %s648 = sld [smem:[#allocation2 + %s647]]
        %v649 = vstv %s648
        %v650 = vadd.f32 %v323, %v649
        %v651 = vmax.f32 %v646, %v650
        %s652 = sadd.s32 %s305, 7
        %s653 = smul.u32 %s652, 4
        %s654 = sadd.s32 %s653, %s306
        %s655 = smul.u32 %s654, 9
        %s656 = sld [smem:[#allocation2 + %s655]]
        %v657 = vstv %s656
        %v658 = vadd.f32 %v307, %v657
        %s659 = sadd.s32 %s655, 1
        %s660 = sld [smem:[#allocation2 + %s659]]
        %v661 = vstv %s660
        %v662 = vadd.f32 %v309, %v661
        %v663 = vmax.f32 %v658, %v662
        %s664 = sadd.s32 %s655, 2
        %s665 = sld [smem:[#allocation2 + %s664]]
        %v666 = vstv %s665
        %v667 = vadd.f32 %v311, %v666
        %v668 = vmax.f32 %v663, %v667
        %s669 = sadd.s32 %s655, 3
        %s670 = sld [smem:[#allocation2 + %s669]]
        %v671 = vstv %s670
        %v672 = vadd.f32 %v313, %v671
        %v673 = vmax.f32 %v668, %v672
        %s674 = sadd.s32 %s655, 4
        %s675 = sld [smem:[#allocation2 + %s674]]
        %v676 = vstv %s675
        %v677 = vadd.f32 %v315, %v676
        %v678 = vmax.f32 %v673, %v677
        %s679 = sadd.s32 %s655, 5
        %s680 = sld [smem:[#allocation2 + %s679]]
        %v681 = vstv %s680
        %v682 = vadd.f32 %v317, %v681
        %v683 = vmax.f32 %v678, %v682
        %s684 = sadd.s32 %s655, 6
        %s685 = sld [smem:[#allocation2 + %s684]]
        %v686 = vstv %s685
        %v687 = vadd.f32 %v319, %v686
        %v688 = vmax.f32 %v683, %v687
        %s689 = sadd.s32 %s655, 7
        %s690 = sld [smem:[#allocation2 + %s689]]
        %v691 = vstv %s690
        %v692 = vadd.f32 %v321, %v691
        %v693 = vmax.f32 %v688, %v692
        %s694 = sadd.s32 %s655, 8
        %s695 = sld [smem:[#allocation2 + %s694]]
        %v696 = vstv %s695
        %v697 = vadd.f32 %v323, %v696
        %v698 = vmax.f32 %v693, %v697
        %s699 = scalar_lea.vmem %s260, 8 [#allocation4]
        %v700 = vld [vmem:[%s699] sm:$0xff]
        %s701 = scalar_lea.vmem %s260, 24 [#allocation4]
        %v702 = vld [vmem:[%s701] sm:$0xff]
        %s703 = scalar_lea.vmem %s260, 40 [#allocation4]
        %v704 = vld [vmem:[%s703] sm:$0xff]
        %s705 = scalar_lea.vmem %s260, 56 [#allocation4]
        %v706 = vld [vmem:[%s705] sm:$0xff]
        %s707 = scalar_lea.vmem %s260, 72 [#allocation4]
        %v708 = vld [vmem:[%s707] sm:$0xff]
        %s709 = scalar_lea.vmem %s260, 88 [#allocation4]
        %v710 = vld [vmem:[%s709] sm:$0xff]
        %s711 = scalar_lea.vmem %s260, 104 [#allocation4]
        %v712 = vld [vmem:[%s711] sm:$0xff]
        %s713 = scalar_lea.vmem %s260, 120 [#allocation4]
        %v714 = vld [vmem:[%s713] sm:$0xff]
        %s715 = scalar_lea.vmem %s260, 136 [#allocation4]
        %v716 = vld [vmem:[%s715] sm:$0xff]
        %s717 = sadd.s32 %s306, 1
        %s718 = sadd.s32 %s324, %s717
        %s719 = smul.u32 %s718, 9
        %s720 = sld [smem:[#allocation2 + %s719]]
        %v721 = vstv %s720
        %v722 = vadd.f32 %v700, %v721
        %s723 = sadd.s32 %s719, 1
        %s724 = sld [smem:[#allocation2 + %s723]]
        %v725 = vstv %s724
        %v726 = vadd.f32 %v702, %v725
        %v727 = vmax.f32 %v722, %v726
        %s728 = sadd.s32 %s719, 2
        %s729 = sld [smem:[#allocation2 + %s728]]
        %v730 = vstv %s729
        %v731 = vadd.f32 %v704, %v730
        %v732 = vmax.f32 %v727, %v731
        %s733 = sadd.s32 %s719, 3
        %s734 = sld [smem:[#allocation2 + %s733]]
        %v735 = vstv %s734
        %v736 = vadd.f32 %v706, %v735
        %v737 = vmax.f32 %v732, %v736
        %s738 = sadd.s32 %s719, 4
        %s739 = sld [smem:[#allocation2 + %s738]]
        %v740 = vstv %s739
        %v741 = vadd.f32 %v708, %v740
        %v742 = vmax.f32 %v737, %v741
        %s743 = sadd.s32 %s719, 5
        %s744 = sld [smem:[#allocation2 + %s743]]
        %v745 = vstv %s744
        %v746 = vadd.f32 %v710, %v745
        %v747 = vmax.f32 %v742, %v746
        %s748 = sadd.s32 %s719, 6
        %s749 = sld [smem:[#allocation2 + %s748]]
        %v750 = vstv %s749
        %v751 = vadd.f32 %v712, %v750
        %v752 = vmax.f32 %v747, %v751
        %s753 = sadd.s32 %s719, 7
        %s754 = sld [smem:[#allocation2 + %s753]]
        %v755 = vstv %s754
        %v756 = vadd.f32 %v714, %v755
        %v757 = vmax.f32 %v752, %v756
        %s758 = sadd.s32 %s719, 8
        %s759 = sld [smem:[#allocation2 + %s758]]
        %v760 = vstv %s759
        %v761 = vadd.f32 %v716, %v760
        %v762 = vmax.f32 %v757, %v761
        %v763 = vmin.f32 %v369, %v762
        %s764 = sadd.s32 %s371, %s717
        %s765 = smul.u32 %s764, 9
        %s766 = sld [smem:[#allocation2 + %s765]]
        %v767 = vstv %s766
        %v768 = vadd.f32 %v700, %v767
        %s769 = sadd.s32 %s765, 1
        %s770 = sld [smem:[#allocation2 + %s769]]
        %v771 = vstv %s770
        %v772 = vadd.f32 %v702, %v771
        %v773 = vmax.f32 %v768, %v772
        %s774 = sadd.s32 %s765, 2
        %s775 = sld [smem:[#allocation2 + %s774]]
        %v776 = vstv %s775
        %v777 = vadd.f32 %v704, %v776
        %v778 = vmax.f32 %v773, %v777
        %s779 = sadd.s32 %s765, 3
        %s780 = sld [smem:[#allocation2 + %s779]]
        %v781 = vstv %s780
        %v782 = vadd.f32 %v706, %v781
        %v783 = vmax.f32 %v778, %v782
        %s784 = sadd.s32 %s765, 4
        %s785 = sld [smem:[#allocation2 + %s784]]
        %v786 = vstv %s785
        %v787 = vadd.f32 %v708, %v786
        %v788 = vmax.f32 %v783, %v787
        %s789 = sadd.s32 %s765, 5
        %s790 = sld [smem:[#allocation2 + %s789]]
        %v791 = vstv %s790
        %v792 = vadd.f32 %v710, %v791
        %v793 = vmax.f32 %v788, %v792
        %s794 = sadd.s32 %s765, 6
        %s795 = sld [smem:[#allocation2 + %s794]]
        %v796 = vstv %s795
        %v797 = vadd.f32 %v712, %v796
        %v798 = vmax.f32 %v793, %v797
        %s799 = sadd.s32 %s765, 7
        %s800 = sld [smem:[#allocation2 + %s799]]
        %v801 = vstv %s800
        %v802 = vadd.f32 %v714, %v801
        %v803 = vmax.f32 %v798, %v802
        %s804 = sadd.s32 %s765, 8
        %s805 = sld [smem:[#allocation2 + %s804]]
        %v806 = vstv %s805
        %v807 = vadd.f32 %v716, %v806
        %v808 = vmax.f32 %v803, %v807
        %v809 = vmin.f32 %v416, %v808
        %s810 = sadd.s32 %s418, %s717
        %s811 = smul.u32 %s810, 9
        %s812 = sld [smem:[#allocation2 + %s811]]
        %v813 = vstv %s812
        %v814 = vadd.f32 %v700, %v813
        %s815 = sadd.s32 %s811, 1
        %s816 = sld [smem:[#allocation2 + %s815]]
        %v817 = vstv %s816
        %v818 = vadd.f32 %v702, %v817
        %v819 = vmax.f32 %v814, %v818
        %s820 = sadd.s32 %s811, 2
        %s821 = sld [smem:[#allocation2 + %s820]]
        %v822 = vstv %s821
        %v823 = vadd.f32 %v704, %v822
        %v824 = vmax.f32 %v819, %v823
        %s825 = sadd.s32 %s811, 3
        %s826 = sld [smem:[#allocation2 + %s825]]
        %v827 = vstv %s826
        %v828 = vadd.f32 %v706, %v827
        %v829 = vmax.f32 %v824, %v828
        %s830 = sadd.s32 %s811, 4
        %s831 = sld [smem:[#allocation2 + %s830]]
        %v832 = vstv %s831
        %v833 = vadd.f32 %v708, %v832
        %v834 = vmax.f32 %v829, %v833
        %s835 = sadd.s32 %s811, 5
        %s836 = sld [smem:[#allocation2 + %s835]]
        %v837 = vstv %s836
        %v838 = vadd.f32 %v710, %v837
        %v839 = vmax.f32 %v834, %v838
        %s840 = sadd.s32 %s811, 6
        %s841 = sld [smem:[#allocation2 + %s840]]
        %v842 = vstv %s841
        %v843 = vadd.f32 %v712, %v842
        %v844 = vmax.f32 %v839, %v843
        %s845 = sadd.s32 %s811, 7
        %s846 = sld [smem:[#allocation2 + %s845]]
        %v847 = vstv %s846
        %v848 = vadd.f32 %v714, %v847
        %v849 = vmax.f32 %v844, %v848
        %s850 = sadd.s32 %s811, 8
        %s851 = sld [smem:[#allocation2 + %s850]]
        %v852 = vstv %s851
        %v853 = vadd.f32 %v716, %v852
        %v854 = vmax.f32 %v849, %v853
        %v855 = vmin.f32 %v463, %v854
        %s856 = sadd.s32 %s465, %s717
        %s857 = smul.u32 %s856, 9
        %s858 = sld [smem:[#allocation2 + %s857]]
        %v859 = vstv %s858
        %v860 = vadd.f32 %v700, %v859
        %s861 = sadd.s32 %s857, 1
        %s862 = sld [smem:[#allocation2 + %s861]]
        %v863 = vstv %s862
        %v864 = vadd.f32 %v702, %v863
        %v865 = vmax.f32 %v860, %v864
        %s866 = sadd.s32 %s857, 2
        %s867 = sld [smem:[#allocation2 + %s866]]
        %v868 = vstv %s867
        %v869 = vadd.f32 %v704, %v868
        %v870 = vmax.f32 %v865, %v869
        %s871 = sadd.s32 %s857, 3
        %s872 = sld [smem:[#allocation2 + %s871]]
        %v873 = vstv %s872
        %v874 = vadd.f32 %v706, %v873
        %v875 = vmax.f32 %v870, %v874
        %s876 = sadd.s32 %s857, 4
        %s877 = sld [smem:[#allocation2 + %s876]]
        %v878 = vstv %s877
        %v879 = vadd.f32 %v708, %v878
        %v880 = vmax.f32 %v875, %v879
        %s881 = sadd.s32 %s857, 5
        %s882 = sld [smem:[#allocation2 + %s881]]
        %v883 = vstv %s882
        %v884 = vadd.f32 %v710, %v883
        %v885 = vmax.f32 %v880, %v884
        %s886 = sadd.s32 %s857, 6
        %s887 = sld [smem:[#allocation2 + %s886]]
        %v888 = vstv %s887
        %v889 = vadd.f32 %v712, %v888
        %v890 = vmax.f32 %v885, %v889
        %s891 = sadd.s32 %s857, 7
        %s892 = sld [smem:[#allocation2 + %s891]]
        %v893 = vstv %s892
        %v894 = vadd.f32 %v714, %v893
        %v895 = vmax.f32 %v890, %v894
        %s896 = sadd.s32 %s857, 8
        %s897 = sld [smem:[#allocation2 + %s896]]
        %v898 = vstv %s897
        %v899 = vadd.f32 %v716, %v898
        %v900 = vmax.f32 %v895, %v899
        %v901 = vmin.f32 %v510, %v900
        %s902 = sadd.s32 %s512, %s717
        %s903 = smul.u32 %s902, 9
        %s904 = sld [smem:[#allocation2 + %s903]]
        %v905 = vstv %s904
        %v906 = vadd.f32 %v700, %v905
        %s907 = sadd.s32 %s903, 1
        %s908 = sld [smem:[#allocation2 + %s907]]
        %v909 = vstv %s908
        %v910 = vadd.f32 %v702, %v909
        %v911 = vmax.f32 %v906, %v910
        %s912 = sadd.s32 %s903, 2
        %s913 = sld [smem:[#allocation2 + %s912]]
        %v914 = vstv %s913
        %v915 = vadd.f32 %v704, %v914
        %v916 = vmax.f32 %v911, %v915
        %s917 = sadd.s32 %s903, 3
        %s918 = sld [smem:[#allocation2 + %s917]]
        %v919 = vstv %s918
        %v920 = vadd.f32 %v706, %v919
        %v921 = vmax.f32 %v916, %v920
        %s922 = sadd.s32 %s903, 4
        %s923 = sld [smem:[#allocation2 + %s922]]
        %v924 = vstv %s923
        %v925 = vadd.f32 %v708, %v924
        %v926 = vmax.f32 %v921, %v925
        %s927 = sadd.s32 %s903, 5
        %s928 = sld [smem:[#allocation2 + %s927]]
        %v929 = vstv %s928
        %v930 = vadd.f32 %v710, %v929
        %v931 = vmax.f32 %v926, %v930
        %s932 = sadd.s32 %s903, 6
        %s933 = sld [smem:[#allocation2 + %s932]]
        %v934 = vstv %s933
        %v935 = vadd.f32 %v712, %v934
        %v936 = vmax.f32 %v931, %v935
        %s937 = sadd.s32 %s903, 7
        %s938 = sld [smem:[#allocation2 + %s937]]
        %v939 = vstv %s938
        %v940 = vadd.f32 %v714, %v939
        %v941 = vmax.f32 %v936, %v940
        %s942 = sadd.s32 %s903, 8
        %s943 = sld [smem:[#allocation2 + %s942]]
        %v944 = vstv %s943
        %v945 = vadd.f32 %v716, %v944
        %v946 = vmax.f32 %v941, %v945
        %v947 = vmin.f32 %v557, %v946
        %s948 = sadd.s32 %s559, %s717
        %s949 = smul.u32 %s948, 9
        %s950 = sld [smem:[#allocation2 + %s949]]
        %v951 = vstv %s950
        %v952 = vadd.f32 %v700, %v951
        %s953 = sadd.s32 %s949, 1
        %s954 = sld [smem:[#allocation2 + %s953]]
        %v955 = vstv %s954
        %v956 = vadd.f32 %v702, %v955
        %v957 = vmax.f32 %v952, %v956
        %s958 = sadd.s32 %s949, 2
        %s959 = sld [smem:[#allocation2 + %s958]]
        %v960 = vstv %s959
        %v961 = vadd.f32 %v704, %v960
        %v962 = vmax.f32 %v957, %v961
        %s963 = sadd.s32 %s949, 3
        %s964 = sld [smem:[#allocation2 + %s963]]
        %v965 = vstv %s964
        %v966 = vadd.f32 %v706, %v965
        %v967 = vmax.f32 %v962, %v966
        %s968 = sadd.s32 %s949, 4
        %s969 = sld [smem:[#allocation2 + %s968]]
        %v970 = vstv %s969
        %v971 = vadd.f32 %v708, %v970
        %v972 = vmax.f32 %v967, %v971
        %s973 = sadd.s32 %s949, 5
        %s974 = sld [smem:[#allocation2 + %s973]]
        %v975 = vstv %s974
        %v976 = vadd.f32 %v710, %v975
        %v977 = vmax.f32 %v972, %v976
        %s978 = sadd.s32 %s949, 6
        %s979 = sld [smem:[#allocation2 + %s978]]
        %v980 = vstv %s979
        %v981 = vadd.f32 %v712, %v980
        %v982 = vmax.f32 %v977, %v981
        %s983 = sadd.s32 %s949, 7
        %s984 = sld [smem:[#allocation2 + %s983]]
        %v985 = vstv %s984
        %v986 = vadd.f32 %v714, %v985
        %v987 = vmax.f32 %v982, %v986
        %s988 = sadd.s32 %s949, 8
        %s989 = sld [smem:[#allocation2 + %s988]]
        %v990 = vstv %s989
        %v991 = vadd.f32 %v716, %v990
        %v992 = vmax.f32 %v987, %v991
        %v993 = vmin.f32 %v604, %v992
        %s994 = sadd.s32 %s606, %s717
        %s995 = smul.u32 %s994, 9
        %s996 = sld [smem:[#allocation2 + %s995]]
        %v997 = vstv %s996
        %v998 = vadd.f32 %v700, %v997
        %s999 = sadd.s32 %s995, 1
        %s1000 = sld [smem:[#allocation2 + %s999]]
        %v1001 = vstv %s1000
        %v1002 = vadd.f32 %v702, %v1001
        %v1003 = vmax.f32 %v998, %v1002
        %s1004 = sadd.s32 %s995, 2
        %s1005 = sld [smem:[#allocation2 + %s1004]]
        %v1006 = vstv %s1005
        %v1007 = vadd.f32 %v704, %v1006
        %v1008 = vmax.f32 %v1003, %v1007
        %s1009 = sadd.s32 %s995, 3
        %s1010 = sld [smem:[#allocation2 + %s1009]]
        %v1011 = vstv %s1010
        %v1012 = vadd.f32 %v706, %v1011
        %v1013 = vmax.f32 %v1008, %v1012
        %s1014 = sadd.s32 %s995, 4
        %s1015 = sld [smem:[#allocation2 + %s1014]]
        %v1016 = vstv %s1015
        %v1017 = vadd.f32 %v708, %v1016
        %v1018 = vmax.f32 %v1013, %v1017
        %s1019 = sadd.s32 %s995, 5
        %s1020 = sld [smem:[#allocation2 + %s1019]]
        %v1021 = vstv %s1020
        %v1022 = vadd.f32 %v710, %v1021
        %v1023 = vmax.f32 %v1018, %v1022
        %s1024 = sadd.s32 %s995, 6
        %s1025 = sld [smem:[#allocation2 + %s1024]]
        %v1026 = vstv %s1025
        %v1027 = vadd.f32 %v712, %v1026
        %v1028 = vmax.f32 %v1023, %v1027
        %s1029 = sadd.s32 %s995, 7
        %s1030 = sld [smem:[#allocation2 + %s1029]]
        %v1031 = vstv %s1030
        %v1032 = vadd.f32 %v714, %v1031
        %v1033 = vmax.f32 %v1028, %v1032
        %s1034 = sadd.s32 %s995, 8
        %s1035 = sld [smem:[#allocation2 + %s1034]]
        %v1036 = vstv %s1035
        %v1037 = vadd.f32 %v716, %v1036
        %v1038 = vmax.f32 %v1033, %v1037
        %v1039 = vmin.f32 %v651, %v1038
        %s1040 = sadd.s32 %s653, %s717
        %s1041 = smul.u32 %s1040, 9
        %s1042 = sld [smem:[#allocation2 + %s1041]]
        %v1043 = vstv %s1042
        %v1044 = vadd.f32 %v700, %v1043
        %s1045 = sadd.s32 %s1041, 1
        %s1046 = sld [smem:[#allocation2 + %s1045]]
        %v1047 = vstv %s1046
        %v1048 = vadd.f32 %v702, %v1047
        %v1049 = vmax.f32 %v1044, %v1048
        %s1050 = sadd.s32 %s1041, 2
        %s1051 = sld [smem:[#allocation2 + %s1050]]
        %v1052 = vstv %s1051
        %v1053 = vadd.f32 %v704, %v1052
        %v1054 = vmax.f32 %v1049, %v1053
        %s1055 = sadd.s32 %s1041, 3
        %s1056 = sld [smem:[#allocation2 + %s1055]]
        %v1057 = vstv %s1056
        %v1058 = vadd.f32 %v706, %v1057
        %v1059 = vmax.f32 %v1054, %v1058
        %s1060 = sadd.s32 %s1041, 4
        %s1061 = sld [smem:[#allocation2 + %s1060]]
        %v1062 = vstv %s1061
        %v1063 = vadd.f32 %v708, %v1062
        %v1064 = vmax.f32 %v1059, %v1063
        %s1065 = sadd.s32 %s1041, 5
        %s1066 = sld [smem:[#allocation2 + %s1065]]
        %v1067 = vstv %s1066
        %v1068 = vadd.f32 %v710, %v1067
        %v1069 = vmax.f32 %v1064, %v1068
        %s1070 = sadd.s32 %s1041, 6
        %s1071 = sld [smem:[#allocation2 + %s1070]]
        %v1072 = vstv %s1071
        %v1073 = vadd.f32 %v712, %v1072
        %v1074 = vmax.f32 %v1069, %v1073
        %s1075 = sadd.s32 %s1041, 7
        %s1076 = sld [smem:[#allocation2 + %s1075]]
        %v1077 = vstv %s1076
        %v1078 = vadd.f32 %v714, %v1077
        %v1079 = vmax.f32 %v1074, %v1078
        %s1080 = sadd.s32 %s1041, 8
        %s1081 = sld [smem:[#allocation2 + %s1080]]
        %v1082 = vstv %s1081
        %v1083 = vadd.f32 %v716, %v1082
        %v1084 = vmax.f32 %v1079, %v1083
        %v1085 = vmin.f32 %v698, %v1084
        %v1086 = vld [vmem:[%s291] sm:$0xff]
        %v1087 = vmin.f32 %v1086, %v763
        %1088 = vst [vmem:[%s291] sm:$0xff] %v1087
        %s1089 = scalar_lea.vmem %s291, 8
        %v1090 = vld [vmem:[%s1089] sm:$0xff]
        %v1091 = vmin.f32 %v1090, %v809
        %1092 = vst [vmem:[%s1089] sm:$0xff] %v1091
        %s1093 = scalar_lea.vmem %s291, 16
        %v1094 = vld [vmem:[%s1093] sm:$0xff]
        %v1095 = vmin.f32 %v1094, %v855
        %1096 = vst [vmem:[%s1093] sm:$0xff] %v1095
        %s1097 = scalar_lea.vmem %s291, 24
        %v1098 = vld [vmem:[%s1097] sm:$0xff]
        %v1099 = vmin.f32 %v1098, %v901
        %1100 = vst [vmem:[%s1097] sm:$0xff] %v1099
        %s1101 = scalar_lea.vmem %s291, 32
        %v1102 = vld [vmem:[%s1101] sm:$0xff]
        %v1103 = vmin.f32 %v1102, %v947
        %1104 = vst [vmem:[%s1101] sm:$0xff] %v1103
        %s1105 = scalar_lea.vmem %s291, 40
        %v1106 = vld [vmem:[%s1105] sm:$0xff]
        %v1107 = vmin.f32 %v1106, %v993
        %1108 = vst [vmem:[%s1105] sm:$0xff] %v1107
        %s1109 = scalar_lea.vmem %s291, 48
        %v1110 = vld [vmem:[%s1109] sm:$0xff]
        %v1111 = vmin.f32 %v1110, %v1039
        %1112 = vst [vmem:[%s1109] sm:$0xff] %v1111
        %s1113 = scalar_lea.vmem %s291, 56
        %v1114 = vld [vmem:[%s1113] sm:$0xff]
        %v1115 = vmin.f32 %v1114, %v1085
        %1116 = vst [vmem:[%s1113] sm:$0xff] %v1115
        %s1117 = smul.u32 8, %s20
        %p1118 = scmp.lt.s32.totalorder %s1117, 7
        %s1119 = scalar_select %p1118, %s1117, 7
        %p1120 = scmp.lt.s32.totalorder %s19, 0
        %s1121 = scalar_select %p1120, %s19, 0
        %s1122 = sadd.s32 %s1121, %s1119
        %s1123 = smul.addr %s1122, 8
        %s1124 = scalar_lea.vmem %s2, %s1123
        // Predicated region
        $region75: #{solid_conv.1} parent=61 // pred_check
          %p1125 = pneg %p102
        $region76: #{solid_conv.1} parent=61 // pred_check_branch
          %1127 = sbr.rel (%p1125) target = $region78
        $region77: #{solid_conv.1} parent=61 // pred_region
          %s1128 = smul.u32 8, %s20
        $region78: #{solid_conv.1} parent=61 // pred_fallthru
          _
        // Predicated region
        $region79: #{solid_conv.1} parent=61 // pred_check
          %p1129 = pneg %p102
        $region80: #{solid_conv.1} parent=61 // pred_check_branch
          %1131 = sbr.rel (%p1129) target = $region82
        $region81: #{solid_conv.1} parent=61 // pred_region
          %s1132 = smul.u32 8, %s20
          %p1133 = scmp.lt.s32.totalorder %s1132, 7
          %s1134 = scalar_select %p1133, %s1132, 7
          %p1135 = scmp.lt.s32.totalorder %s19, 0
          %s1136 = scalar_select %p1135, %s19, 0
          %s1137 = sadd.s32 %s1136, %s1134
          %s1138 = smul.addr %s1137, 8
          %s1139 = scalar_lea.vmem %s2, %s1138
        $region82: #{solid_conv.1} parent=61 // pred_fallthru
          _
      $region62: #{solid_conv.1} parent=5 // pred_fallthru
        _
      %p1140 = scmp.le.s32.totalorder 2, %s9
      // Predicated region
      $region83: #{solid_conv.1} parent=5 // pred_check
        %p1141 = pneg %p1140
      $region84: #{solid_conv.1} parent=5 // pred_check_branch
        %1143 = sbr.rel (%p1141) target = $region86
      $region85: #{solid_conv.1} parent=5 // pred_region
        %s1144 = ssub.s32 %s9, 2
      $region86: #{solid_conv.1} parent=5 // pred_fallthru
        _
    $region6: #{solid_conv.1} parent=1 // loop_footer
      %s13 = sadd.s32 1, %s9
    $region7: #{solid_conv.1} parent=1 // loop_footer_branch
      %8 = sbr.rel target = $region3
    $region8: #{solid_conv.1} parent=1 // loop_exit
      _
    %1145 = vsyncpa [#allocation3], 1
    %s1146 = scalar_lea.sflag [#allocation3], 1
    %1147 = vsyncpa %s1146, 1

</llo_original>
